<compile_context>
chip_gen: v5e
topology: v5e:2x2
jax: 0.10.0
libtpu: 0.0.40
codegen_flags: <defaults>
</compile_context>

<pallas_src>
import jax
import jax.numpy as jnp
from jax.experimental import pallas as pl
from jax.experimental.pallas import tpu as pltpu

LANE = 128


# ----------------------------- helpers --------------------------------------

def _row_tile(rows, cap=1024):
    """Row tile: exact divisor of `rows`, multiple of 16 (bf16 sublanes),
    <= cap, and preferring >=2 grid steps (v7x megacore)."""
    half = rows // 2
    if rows % 2 == 0 and half % 16 == 0 and half <= cap:
        return half
    best = None
    t = 16
    while t <= min(cap, rows):
        if rows % t == 0:
            best = t
        t += 16
    return best if best is not None else rows   # full-dim block is always legal


# ----------------------------- Pallas kernels -------------------------------

def _conv_relu_pool_kernel(cols_ref, w_ref, b_ref, o_ref):
    # cols: (4, tm, K) quadrant-major im2col (bf16); w: (K, Cout) bf16;
    # b: (1, Cout) f32.  out[r] = max over 4 pool quadrants of relu(cols@w + b).
    w = w_ref[...]
    b = b_ref[...]

    def quad(q):
        acc = jnp.dot(cols_ref[q], w, preferred_element_type=jnp.float32)
        return jnp.maximum(acc + b, 0.0)

    o_ref[...] = jnp.maximum(jnp.maximum(quad(0), quad(1)),
                             jnp.maximum(quad(2), quad(3))).astype(o_ref.dtype)


def conv_relu_pool(cols, w_t, b_row):
    """Fused conv (im2col matmul) + bias + ReLU + 2x2 max pool (conv1)."""
    _, rows, kdim = cols.shape
    cout = w_t.shape[1]
    tm = _row_tile(rows)
    assert rows % tm == 0, (rows, tm)
    return pl.pallas_call(
        _conv_relu_pool_kernel,
        out_shape=jax.ShapeDtypeStruct((rows, cout), jnp.bfloat16),
        grid_spec=pltpu.PrefetchScalarGridSpec(
            num_scalar_prefetch=0,
            grid=(rows // tm,),
            in_specs=[
                pl.BlockSpec((4, tm, kdim), lambda i: (0, i, 0)),
                pl.BlockSpec((kdim, cout), lambda i: (0, 0)),
                pl.BlockSpec((1, cout), lambda i: (0, 0)),
            ],
            out_specs=pl.BlockSpec((tm, cout), lambda i: (i, 0)),
        ),
        compiler_params=pltpu.CompilerParams(
            dimension_semantics=("parallel",)),
    )(cols, w_t, b_row)


def _conv2_fc_kernel(cols_ref, w2_ref, b2_ref, w1_ref, b1_ref,
                     wf2_ref, bf2_ref, wf3_ref, bf3_ref, o_ref):
    # Fused conv2 + bias + ReLU + 2x2 pool + fc1 + ReLU + fc2 + ReLU + fc3.
    # cols: (4, 16*B, 150) bf16, rows ordered (p=hp*4+wp, b).
    B = o_ref.shape[0]
    w2 = w2_ref[...]
    b2 = b2_ref[...]

    def quad(q):
        acc = jnp.dot(cols_ref[q], w2, preferred_element_type=jnp.float32)
        return jnp.maximum(acc + b2, 0.0)

    pooled = jnp.maximum(jnp.maximum(quad(0), quad(1)),
                         jnp.maximum(quad(2), quad(3)))      # (16*B, 128) f32

    # fc1 over the compact 256 = 16 positions x 16 real channels; weight rows
    # are (p, c)-major so each position is a static 16-row block.
    w1 = w1_ref[...]                                         # (256, 128) bf16
    h = jnp.zeros((B, LANE), jnp.float32)
    for p in range(16):
        xp = pooled[p * B:(p + 1) * B, :16].astype(jnp.bfloat16)   # (B, 16)
        wp = w1[p * 16:(p + 1) * 16, :]                            # (16, 128)
        h = h + jnp.dot(xp, wp, preferred_element_type=jnp.float32)
    h = jnp.maximum(h + b1_ref[...], 0.0)

    h = jnp.dot(h.astype(jnp.bfloat16), wf2_ref[...],
                preferred_element_type=jnp.float32)
    h = jnp.maximum(h + bf2_ref[...], 0.0)

    h = jnp.dot(h.astype(jnp.bfloat16), wf3_ref[...],
                preferred_element_type=jnp.float32)
    o_ref[...] = (h + bf3_ref[...]).astype(o_ref.dtype)


def conv2_fc_fused(cols2, w2, b2, w1f, b1f, w2f, b2f, w3f, b3f, batch):
    return pl.pallas_call(
        _conv2_fc_kernel,
        out_shape=jax.ShapeDtypeStruct((batch, 10), jnp.float32),
        in_specs=[pl.BlockSpec(memory_space=pltpu.MemorySpace.VMEM)] * 9,
        out_specs=pl.BlockSpec(memory_space=pltpu.MemorySpace.VMEM),
    )(cols2, w2, b2, w1f, b1f, w2f, b2f, w3f, b3f)


# ----------------------------- XLA glue (layout only) ------------------------

def im2col_pool_quadrants(x, k, batch_minor=False):
    """x: (B, H, W, C) NHWC -> (4, B*Hp*Wp, k*k*C).

    Axis 0 is the 2x2-pool quadrant (qh, qw); columns are (dh, dw, c).
    Rows are (b, hp, wp) by default, or (hp, wp, b) if batch_minor=True.
    """
    B, H, W, C = x.shape
    Ho, Wo = H - k + 1, W - k + 1
    Hp, Wp = Ho // 2, Wo // 2
    patches = jnp.stack(
        [x[:, dh:dh + Ho, dw:dw + Wo, :] for dh in range(k) for dw in range(k)],
        axis=3)                                            # (B, Ho, Wo, kk, C)
    patches = patches.reshape(B, Hp, 2, Wp, 2, k * k, C)
    if batch_minor:
        patches = patches.transpose(2, 4, 1, 3, 0, 5, 6)   # (qh,qw,Hp,Wp,B,kk,C)
    else:
        patches = patches.transpose(2, 4, 0, 1, 3, 5, 6)   # (qh,qw,B,Hp,Wp,kk,C)
    return patches.reshape(4, B * Hp * Wp, k * k * C), Hp, Wp


def prepare_params(params):
    """One-time weight re-layout: (K, N) bf16, torch->kernel column/row
    permutations, zero padding only where it feeds 128-wide accumulators."""
    # conv1: (6,3,5,5) -> (75, 6), rows ordered (dh, dw, cin); only real chans.
    c1w = params["conv1_w"].transpose(2, 3, 1, 0).reshape(75, 6)
    c1w = c1w.astype(jnp.bfloat16)
    c1b = params["conv1_b"].reshape(1, 6).astype(jnp.float32)

    # conv2: (16,6,5,5) -> (150, 128) (16 -> 128 zero-padded output lanes).
    c2w = params["conv2_w"].transpose(2, 3, 1, 0).reshape(150, 16)
    c2w = jnp.pad(c2w, ((0, 0), (0, LANE - 16))).astype(jnp.bfloat16)
    c2b = jnp.pad(params["conv2_b"], (0, LANE - 16)).reshape(1, LANE)

    # fc1: torch columns are (c, hp, wp); our pooled rows are (p=hp*4+wp, b)
    # and we keep only the 16 real channels -> rows ordered (p, c): (256, 128).
    f1 = params["fc1_w"].reshape(120, 16, 4, 4).transpose(2, 3, 1, 0)  # hp,wp,c,o
    f1 = f1.reshape(256, 120)
    f1w = jnp.pad(f1, ((0, 0), (0, LANE - 120))).astype(jnp.bfloat16)
    f1b = jnp.pad(params["fc1_b"], (0, LANE - 120)).reshape(1, LANE)

    f2w = jnp.pad(params["fc2_w"].T,
                  ((0, LANE - 120), (0, LANE - 84))).astype(jnp.bfloat16)
    f2b = jnp.pad(params["fc2_b"], (0, LANE - 84)).reshape(1, LANE)

    f3w = jnp.pad(params["fc3_w"].T, ((0, LANE - 84), (0, 0)))      # (128, 10)
    f3w = f3w.astype(jnp.bfloat16)
    f3b = params["fc3_b"].reshape(1, 10).astype(jnp.float32)

    return {"conv1_w": c1w, "conv1_b": c1b, "conv2_w": c2w, "conv2_b": c2b,
            "fc1_w": f1w, "fc1_b": f1b, "fc2_w": f2w, "fc2_b": f2b,
            "fc3_w": f3w, "fc3_b": f3b}


def init_params(key):
    """Deterministic init matching torch default (uniform +-1/sqrt(fan_in))."""
    def uni(k, shape, fan_in):
        bound = 1.0 / (fan_in ** 0.5)
        return jax.random.uniform(k, shape, jnp.float32, -bound, bound)

    ks = jax.random.split(key, 10)
    return {
        "conv1_w": uni(ks[0], (6, 3, 5, 5), 3 * 5 * 5),
        "conv1_b": uni(ks[1], (6,), 3 * 5 * 5),
        "conv2_w": uni(ks[2], (16, 6, 5, 5), 6 * 5 * 5),
        "conv2_b": uni(ks[3], (16,), 6 * 5 * 5),
        "fc1_w":   uni(ks[4], (120, 16 * 4 * 4), 16 * 4 * 4),
        "fc1_b":   uni(ks[5], (120,), 16 * 4 * 4),
        "fc2_w":   uni(ks[6], (84, 120), 120),
        "fc2_b":   uni(ks[7], (84,), 120),
        "fc3_w":   uni(ks[8], (10, 84), 84),
        "fc3_b":   uni(ks[9], (10,), 84),
    }


@jax.jit
def net_forward(prep, x):
    # x: (B, 3, 28, 28) float32 (torch NCHW layout; 28x28 => fc1 in = 16*4*4).
    B = x.shape[0]
    x = x.transpose(0, 2, 3, 1).astype(jnp.bfloat16)       # NHWC bf16, once.

    # conv1 (5x5, 3->6) + ReLU + 2x2 pool (fused)  -> (B*12*12, 6) bf16.
    cols1, hp, wp = im2col_pool_quadrants(x, 5)
    h = conv_relu_pool(cols1, prep["conv1_w"], prep["conv1_b"])

    # conv2 (5x5, 6->16) + ReLU + pool + fc1 + fc2 + fc3, all in ONE kernel.
    h = h.reshape(B, hp, wp, 6)
    cols2, _, _ = im2col_pool_quadrants(h, 5, batch_minor=True)   # (4, 16B, 150)
    out = conv2_fc_fused(cols2, prep["conv2_w"], prep["conv2_b"],
                         prep["fc1_w"], prep["fc1_b"],
                         prep["fc2_w"], prep["fc2_b"],
                         prep["fc3_w"], prep["fc3_b"], B)
    return out                                              # (B, 10) f32


if __name__ == "__main__":
    key = jax.random.PRNGKey(0)
    pkey, xkey = jax.random.split(key)
    params = init_params(pkey)
    prep = prepare_params(params)          # one-time weight re-layout / padding

    # 28x28 input => 16*4*4 = 256 features before fc1, matching the module.
    x = jax.random.normal(xkey, (2, 3, 28, 28), dtype=jnp.float32)

    out = jax.block_until_ready(net_forward(prep, x))
    assert out.shape == (2, 10) and out.dtype == jnp.float32
    assert bool(jnp.all(jnp.isfinite(out)))
    print("KERNEL_OK")
</pallas_src>

<mosaic_0001>
module attributes {stable_mosaic.version = 11 : i64} {
  func.func @_conv_relu_pool_kernel(%arg0: i32, %arg1: memref<4x144x75xbf16, #tpu.memory_space<vmem>>, %arg2: memref<75x6xbf16, #tpu.memory_space<vmem>>, %arg3: memref<1x6xf32, #tpu.memory_space<vmem>>, %arg4: memref<144x6xbf16, #tpu.memory_space<vmem>>) attributes {dimension_semantics = [#tpu.dimension_semantics<parallel>], iteration_bounds = array<i64: 2>, scalar_prefetch = 0 : i64, scratch_operands = 0 : i64, tpu.core_type = #tpu.core_type<tc>, window_params = [{transform_indices = @transform_0, window_bounds = array<i64: 4, 144, 75>}, {pipeline_mode = #tpu.pipeline_mode<synchronous>, transform_indices = @transform_1, window_bounds = array<i64: 75, 6>}, {pipeline_mode = #tpu.pipeline_mode<synchronous>, transform_indices = @transform_2, window_bounds = array<i64: 1, 6>}, {transform_indices = @transform_3, window_bounds = array<i64: 144, 6>}]} {
    %c0 = arith.constant 0 : index
    %c0_0 = arith.constant 0 : index
    %0 = vector.load %arg2[%c0, %c0_0] : memref<75x6xbf16, #tpu.memory_space<vmem>>, vector<75x6xbf16>
    %c0_1 = arith.constant 0 : index
    %c0_2 = arith.constant 0 : index
    %1 = vector.load %arg3[%c0_1, %c0_2] : memref<1x6xf32, #tpu.memory_space<vmem>>, vector<1x6xf32>
    %c0_3 = arith.constant 0 : index
    %c0_4 = arith.constant 0 : index
    %c0_5 = arith.constant 0 : index
    %2 = vector.load %arg1[%c0_3, %c0_4, %c0_5] : memref<4x144x75xbf16, #tpu.memory_space<vmem>>, vector<1x144x75xbf16>
    %3 = vector.shape_cast %2 : vector<1x144x75xbf16> to vector<144x75xbf16>
    %cst = arith.constant dense<0.000000e+00> : vector<144x6xf32>
    %4 = tpu.matmul %3, %0, %cst {dimension_numbers = #tpu.dot_dimension_numbers<[1], [0], [0], [1], [0, 0, 1, 1], [], []>} : vector<144x75xbf16>, vector<75x6xbf16>, vector<144x6xf32> -> vector<144x6xf32>
    %5 = vector.broadcast %1 : vector<1x6xf32> to vector<144x6xf32>
    %6 = arith.addf %4, %5 : vector<144x6xf32>
    %cst_6 = arith.constant 0.000000e+00 : f32
    %7 = vector.broadcast %cst_6 : f32 to vector<144x6xf32>
    %8 = arith.maximumf %6, %7 : vector<144x6xf32>
    %c1 = arith.constant 1 : index
    %c0_7 = arith.constant 0 : index
    %c0_8 = arith.constant 0 : index
    %9 = vector.load %arg1[%c1, %c0_7, %c0_8] : memref<4x144x75xbf16, #tpu.memory_space<vmem>>, vector<1x144x75xbf16>
    %10 = vector.shape_cast %9 : vector<1x144x75xbf16> to vector<144x75xbf16>
    %cst_9 = arith.constant dense<0.000000e+00> : vector<144x6xf32>
    %11 = tpu.matmul %10, %0, %cst_9 {dimension_numbers = #tpu.dot_dimension_numbers<[1], [0], [0], [1], [0, 0, 1, 1], [], []>} : vector<144x75xbf16>, vector<75x6xbf16>, vector<144x6xf32> -> vector<144x6xf32>
    %12 = vector.broadcast %1 : vector<1x6xf32> to vector<144x6xf32>
    %13 = arith.addf %11, %12 : vector<144x6xf32>
    %cst_10 = arith.constant 0.000000e+00 : f32
    %14 = vector.broadcast %cst_10 : f32 to vector<144x6xf32>
    %15 = arith.maximumf %13, %14 : vector<144x6xf32>
    %16 = arith.maximumf %8, %15 : vector<144x6xf32>
    %c2 = arith.constant 2 : index
    %c0_11 = arith.constant 0 : index
    %c0_12 = arith.constant 0 : index
    %17 = vector.load %arg1[%c2, %c0_11, %c0_12] : memref<4x144x75xbf16, #tpu.memory_space<vmem>>, vector<1x144x75xbf16>
    %18 = vector.shape_cast %17 : vector<1x144x75xbf16> to vector<144x75xbf16>
    %cst_13 = arith.constant dense<0.000000e+00> : vector<144x6xf32>
    %19 = tpu.matmul %18, %0, %cst_13 {dimension_numbers = #tpu.dot_dimension_numbers<[1], [0], [0], [1], [0, 0, 1, 1], [], []>} : vector<144x75xbf16>, vector<75x6xbf16>, vector<144x6xf32> -> vector<144x6xf32>
    %20 = vector.broadcast %1 : vector<1x6xf32> to vector<144x6xf32>
    %21 = arith.addf %19, %20 : vector<144x6xf32>
    %cst_14 = arith.constant 0.000000e+00 : f32
    %22 = vector.broadcast %cst_14 : f32 to vector<144x6xf32>
    %23 = arith.maximumf %21, %22 : vector<144x6xf32>
    %c3 = arith.constant 3 : index
    %c0_15 = arith.constant 0 : index
    %c0_16 = arith.constant 0 : index
    %24 = vector.load %arg1[%c3, %c0_15, %c0_16] : memref<4x144x75xbf16, #tpu.memory_space<vmem>>, vector<1x144x75xbf16>
    %25 = vector.shape_cast %24 : vector<1x144x75xbf16> to vector<144x75xbf16>
    %cst_17 = arith.constant dense<0.000000e+00> : vector<144x6xf32>
    %26 = tpu.matmul %25, %0, %cst_17 {dimension_numbers = #tpu.dot_dimension_numbers<[1], [0], [0], [1], [0, 0, 1, 1], [], []>} : vector<144x75xbf16>, vector<75x6xbf16>, vector<144x6xf32> -> vector<144x6xf32>
    %27 = vector.broadcast %1 : vector<1x6xf32> to vector<144x6xf32>
    %28 = arith.addf %26, %27 : vector<144x6xf32>
    %cst_18 = arith.constant 0.000000e+00 : f32
    %29 = vector.broadcast %cst_18 : f32 to vector<144x6xf32>
    %30 = arith.maximumf %28, %29 : vector<144x6xf32>
    %31 = arith.maximumf %23, %30 : vector<144x6xf32>
    %32 = arith.maximumf %16, %31 : vector<144x6xf32>
    %33 = arith.truncf %32 : vector<144x6xf32> to vector<144x6xbf16>
    %c0_19 = arith.constant 0 : index
    %c0_20 = arith.constant 0 : index
    %34 = vector.load %arg4[%c0_19, %c0_20] : memref<144x6xbf16, #tpu.memory_space<vmem>>, vector<144x6xbf16>
    tpu.vector_store %arg4[%c0_19, %c0_20], %33 {strides = array<i32>} : memref<144x6xbf16, #tpu.memory_space<vmem>>, vector<144x6xbf16>,
    return
  }
  func.func @transform_0(%arg0: i32) -> (i32, i32, i32) {
    %c0_i32 = arith.constant 0 : i32
    %c0_i32_0 = arith.constant 0 : i32
    %c0_i32_1 = arith.constant 0 : i32
    return %c0_i32, %arg0, %c0_i32_0 : i32, i32, i32
  }
  func.func @transform_1(%arg0: i32) -> (i32, i32) {
    %c0_i32 = arith.constant 0 : i32
    %c0_i32_0 = arith.constant 0 : i32
    %c0_i32_1 = arith.constant 0 : i32
    return %c0_i32, %c0_i32_0 : i32, i32
  }
  func.func @transform_2(%arg0: i32) -> (i32, i32) {
    %c0_i32 = arith.constant 0 : i32
    %c0_i32_0 = arith.constant 0 : i32
    %c0_i32_1 = arith.constant 0 : i32
    return %c0_i32, %c0_i32_0 : i32, i32
  }
  func.func @transform_3(%arg0: i32) -> (i32, i32) {
    %c0_i32 = arith.constant 0 : i32
    %c0_i32_0 = arith.constant 0 : i32
    return %arg0, %c0_i32 : i32, i32
  }
}

module attributes {stable_mosaic.version = 11 : i64} {
  func.func @_conv2_fc_kernel(%arg0: memref<4x32x150xbf16, #tpu.memory_space<vmem>>, %arg1: memref<150x128xbf16, #tpu.memory_space<vmem>>, %arg2: memref<1x128xf32, #tpu.memory_space<vmem>>, %arg3: memref<256x128xbf16, #tpu.memory_space<vmem>>, %arg4: memref<1x128xf32, #tpu.memory_space<vmem>>, %arg5: memref<128x128xbf16, #tpu.memory_space<vmem>>, %arg6: memref<1x128xf32, #tpu.memory_space<vmem>>, %arg7: memref<128x10xbf16, #tpu.memory_space<vmem>>, %arg8: memref<1x10xf32, #tpu.memory_space<vmem>>, %arg9: memref<2x10xf32, #tpu.memory_space<vmem>>) attributes {dimension_semantics = [], scalar_prefetch = 0 : i64, scratch_operands = 0 : i64, tpu.core_type = #tpu.core_type<tc>} {
    %c0 = arith.constant 0 : index
    %c0_0 = arith.constant 0 : index
    %0 = vector.load %arg1[%c0, %c0_0] : memref<150x128xbf16, #tpu.memory_space<vmem>>, vector<150x128xbf16>
    %c0_1 = arith.constant 0 : index
    %c0_2 = arith.constant 0 : index
    %1 = vector.load %arg2[%c0_1, %c0_2] : memref<1x128xf32, #tpu.memory_space<vmem>>, vector<1x128xf32>
    %c0_3 = arith.constant 0 : index
    %c0_4 = arith.constant 0 : index
    %c0_5 = arith.constant 0 : index
    %2 = vector.load %arg0[%c0_3, %c0_4, %c0_5] : memref<4x32x150xbf16, #tpu.memory_space<vmem>>, vector<1x32x150xbf16>
    %3 = vector.shape_cast %2 : vector<1x32x150xbf16> to vector<32x150xbf16>
    %cst = arith.constant dense<0.000000e+00> : vector<32x128xf32>
    %4 = tpu.matmul %3, %0, %cst {dimension_numbers = #tpu.dot_dimension_numbers<[1], [0], [0], [1], [0, 0, 1, 1], [], []>} : vector<32x150xbf16>, vector<150x128xbf16>, vector<32x128xf32> -> vector<32x128xf32>
    %5 = vector.broadcast %1 : vector<1x128xf32> to vector<32x128xf32>
    %6 = arith.addf %4, %5 : vector<32x128xf32>
    %cst_6 = arith.constant 0.000000e+00 : f32
    %7 = vector.broadcast %cst_6 : f32 to vector<32x128xf32>
    %8 = arith.maximumf %6, %7 : vector<32x128xf32>
    %c1 = arith.constant 1 : index
    %c0_7 = arith.constant 0 : index
    %c0_8 = arith.constant 0 : index
    %9 = vector.load %arg0[%c1, %c0_7, %c0_8] : memref<4x32x150xbf16, #tpu.memory_space<vmem>>, vector<1x32x150xbf16>
    %10 = vector.shape_cast %9 : vector<1x32x150xbf16> to vector<32x150xbf16>
    %cst_9 = arith.constant dense<0.000000e+00> : vector<32x128xf32>
    %11 = tpu.matmul %10, %0, %cst_9 {dimension_numbers = #tpu.dot_dimension_numbers<[1], [0], [0], [1], [0, 0, 1, 1], [], []>} : vector<32x150xbf16>, vector<150x128xbf16>, vector<32x128xf32> -> vector<32x128xf32>
    %12 = vector.broadcast %1 : vector<1x128xf32> to vector<32x128xf32>
    %13 = arith.addf %11, %12 : vector<32x128xf32>
    %cst_10 = arith.constant 0.000000e+00 : f32
    %14 = vector.broadcast %cst_10 : f32 to vector<32x128xf32>
    %15 = arith.maximumf %13, %14 : vector<32x128xf32>
    %16 = arith.maximumf %8, %15 : vector<32x128xf32>
    %c2 = arith.constant 2 : index
    %c0_11 = arith.constant 0 : index
    %c0_12 = arith.constant 0 : index
    %17 = vector.load %arg0[%c2, %c0_11, %c0_12] : memref<4x32x150xbf16, #tpu.memory_space<vmem>>, vector<1x32x150xbf16>
    %18 = vector.shape_cast %17 : vector<1x32x150xbf16> to vector<32x150xbf16>
    %cst_13 = arith.constant dense<0.000000e+00> : vector<32x128xf32>
    %19 = tpu.matmul %18, %0, %cst_13 {dimension_numbers = #tpu.dot_dimension_numbers<[1], [0], [0], [1], [0, 0, 1, 1], [], []>} : vector<32x150xbf16>, vector<150x128xbf16>, vector<32x128xf32> -> vector<32x128xf32>
    %20 = vector.broadcast %1 : vector<1x128xf32> to vector<32x128xf32>
    %21 = arith.addf %19, %20 : vector<32x128xf32>
    %cst_14 = arith.constant 0.000000e+00 : f32
    %22 = vector.broadcast %cst_14 : f32 to vector<32x128xf32>
    %23 = arith.maximumf %21, %22 : vector<32x128xf32>
    %c3 = arith.constant 3 : index
    %c0_15 = arith.constant 0 : index
    %c0_16 = arith.constant 0 : index
    %24 = vector.load %arg0[%c3, %c0_15, %c0_16] : memref<4x32x150xbf16, #tpu.memory_space<vmem>>, vector<1x32x150xbf16>
    %25 = vector.shape_cast %24 : vector<1x32x150xbf16> to vector<32x150xbf16>
    %cst_17 = arith.constant dense<0.000000e+00> : vector<32x128xf32>
    %26 = tpu.matmul %25, %0, %cst_17 {dimension_numbers = #tpu.dot_dimension_numbers<[1], [0], [0], [1], [0, 0, 1, 1], [], []>} : vector<32x150xbf16>, vector<150x128xbf16>, vector<32x128xf32> -> vector<32x128xf32>
    %27 = vector.broadcast %1 : vector<1x128xf32> to vector<32x128xf32>
    %28 = arith.addf %26, %27 : vector<32x128xf32>
    %cst_18 = arith.constant 0.000000e+00 : f32
    %29 = vector.broadcast %cst_18 : f32 to vector<32x128xf32>
    %30 = arith.maximumf %28, %29 : vector<32x128xf32>
    %31 = arith.maximumf %23, %30 : vector<32x128xf32>
    %32 = arith.maximumf %16, %31 : vector<32x128xf32>
    %c0_19 = arith.constant 0 : index
    %c0_20 = arith.constant 0 : index
    %33 = vector.load %arg3[%c0_19, %c0_20] : memref<256x128xbf16, #tpu.memory_space<vmem>>, vector<256x128xbf16>
    %cst_21 = arith.constant 0.000000e+00 : f32
    %34 = vector.broadcast %cst_21 : f32 to vector<2x128xf32>
    %35 = vector.extract_strided_slice %32 {offsets = [0, 0], sizes = [2, 16], strides = [1, 1]} : vector<32x128xf32> to vector<2x16xf32>
    %36 = arith.truncf %35 : vector<2x16xf32> to vector<2x16xbf16>
    %37 = vector.extract_strided_slice %33 {offsets = [0, 0], sizes = [16, 128], strides = [1, 1]} : vector<256x128xbf16> to vector<16x128xbf16>
    %cst_22 = arith.constant dense<0.000000e+00> : vector<2x128xf32>
    %38 = tpu.matmul %36, %37, %cst_22 {dimension_numbers = #tpu.dot_dimension_numbers<[1], [0], [0], [1], [0, 0, 1, 1], [], []>} : vector<2x16xbf16>, vector<16x128xbf16>, vector<2x128xf32> -> vector<2x128xf32>
    %39 = arith.addf %34, %38 : vector<2x128xf32>
    %40 = vector.extract_strided_slice %32 {offsets = [2, 0], sizes = [2, 16], strides = [1, 1]} : vector<32x128xf32> to vector<2x16xf32>
    %41 = arith.truncf %40 : vector<2x16xf32> to vector<2x16xbf16>
    %42 = vector.extract_strided_slice %33 {offsets = [16, 0], sizes = [16, 128], strides = [1, 1]} : vector<256x128xbf16> to vector<16x128xbf16>
    %cst_23 = arith.constant dense<0.000000e+00> : vector<2x128xf32>
    %43 = tpu.matmul %41, %42, %cst_23 {dimension_numbers = #tpu.dot_dimension_numbers<[1], [0], [0], [1], [0, 0, 1, 1], [], []>} : vector<2x16xbf16>, vector<16x128xbf16>, vector<2x128xf32> -> vector<2x128xf32>
    %44 = arith.addf %39, %43 : vector<2x128xf32>
    %45 = vector.extract_strided_slice %32 {offsets = [4, 0], sizes = [2, 16], strides = [1, 1]} : vector<32x128xf32> to vector<2x16xf32>
    %46 = arith.truncf %45 : vector<2x16xf32> to vector<2x16xbf16>
    %47 = vector.extract_strided_slice %33 {offsets = [32, 0], sizes = [16, 128], strides = [1, 1]} : vector<256x128xbf16> to vector<16x128xbf16>
    %cst_24 = arith.constant dense<0.000000e+00> : vector<2x128xf32>
    %48 = tpu.matmul %46, %47, %cst_24 {dimension_numbers = #tpu.dot_dimension_numbers<[1], [0], [0], [1], [0, 0, 1, 1], [], []>} : vector<2x16xbf16>, vector<16x128xbf16>, vector<2x128xf32> -> vector<2x128xf32>
    %49 = arith.addf %44, %48 : vector<2x128xf32>
    %50 = vector.extract_strided_slice %32 {offsets = [6, 0], sizes = [2, 16], strides = [1, 1]} : vector<32x128xf32> to vector<2x16xf32>
    %51 = arith.truncf %50 : vector<2x16xf32> to vector<2x16xbf16>
    %52 = vector.extract_strided_slice %33 {offsets = [48, 0], sizes = [16, 128], strides = [1, 1]} : vector<256x128xbf16> to vector<16x128xbf16>
    %cst_25 = arith.constant dense<0.000000e+00> : vector<2x128xf32>
    %53 = tpu.matmul %51, %52, %cst_25 {dimension_numbers = #tpu.dot_dimension_numbers<[1], [0], [0], [1], [0, 0, 1, 1], [], []>} : vector<2x16xbf16>, vector<16x128xbf16>, vector<2x128xf32> -> vector<2x128xf32>
    %54 = arith.addf %49, %53 : vector<2x128xf32>
    %55 = vector.extract_strided_slice %32 {offsets = [8, 0], sizes = [2, 16], strides = [1, 1]} : vector<32x128xf32> to vector<2x16xf32>
    %56 = arith.truncf %55 : vector<2x16xf32> to vector<2x16xbf16>
    %57 = vector.extract_strided_slice %33 {offsets = [64, 0], sizes = [16, 128], strides = [1, 1]} : vector<256x128xbf16> to vector<16x128xbf16>
    %cst_26 = arith.constant dense<0.000000e+00> : vector<2x128xf32>
    %58 = tpu.matmul %56, %57, %cst_26 {dimension_numbers = #tpu.dot_dimension_numbers<[1], [0], [0], [1], [0, 0, 1, 1], [], []>} : vector<2x16xbf16>, vector<16x128xbf16>, vector<2x128xf32> -> vector<2x128xf32>
    %59 = arith.addf %54, %58 : vector<2x128xf32>
    %60 = vector.extract_strided_slice %32 {offsets = [10, 0], sizes = [2, 16], strides = [1, 1]} : vector<32x128xf32> to vector<2x16xf32>
    %61 = arith.truncf %60 : vector<2x16xf32> to vector<2x16xbf16>
    %62 = vector.extract_strided_slice %33 {offsets = [80, 0], sizes = [16, 128], strides = [1, 1]} : vector<256x128xbf16> to vector<16x128xbf16>
    %cst_27 = arith.constant dense<0.000000e+00> : vector<2x128xf32>
    %63 = tpu.matmul %61, %62, %cst_27 {dimension_numbers = #tpu.dot_dimension_numbers<[1], [0], [0], [1], [0, 0, 1, 1], [], []>} : vector<2x16xbf16>, vector<16x128xbf16>, vector<2x128xf32> -> vector<2x128xf32>
    %64 = arith.addf %59, %63 : vector<2x128xf32>
    %65 = vector.extract_strided_slice %32 {offsets = [12, 0], sizes = [2, 16], strides = [1, 1]} : vector<32x128xf32> to vector<2x16xf32>
    %66 = arith.truncf %65 : vector<2x16xf32> to vector<2x16xbf16>
    %67 = vector.extract_strided_slice %33 {offsets = [96, 0], sizes = [16, 128], strides = [1, 1]} : vector<256x128xbf16> to vector<16x128xbf16>
    %cst_28 = arith.constant dense<0.000000e+00> : vector<2x128xf32>
    %68 = tpu.matmul %66, %67, %cst_28 {dimension_numbers = #tpu.dot_dimension_numbers<[1], [0], [0], [1], [0, 0, 1, 1], [], []>} : vector<2x16xbf16>, vector<16x128xbf16>, vector<2x128xf32> -> vector<2x128xf32>
    %69 = arith.addf %64, %68 : vector<2x128xf32>
    %70 = vector.extract_strided_slice %32 {offsets = [14, 0], sizes = [2, 16], strides = [1, 1]} : vector<32x128xf32> to vector<2x16xf32>
    %71 = arith.truncf %70 : vector<2x16xf32> to vector<2x16xbf16>
    %72 = vector.extract_strided_slice %33 {offsets = [112, 0], sizes = [16, 128], strides = [1, 1]} : vector<256x128xbf16> to vector<16x128xbf16>
    %cst_29 = arith.constant dense<0.000000e+00> : vector<2x128xf32>
    %73 = tpu.matmul %71, %72, %cst_29 {dimension_numbers = #tpu.dot_dimension_numbers<[1], [0], [0], [1], [0, 0, 1, 1], [], []>} : vector<2x16xbf16>, vector<16x128xbf16>, vector<2x128xf32> -> vector<2x128xf32>
    %74 = arith.addf %69, %73 : vector<2x128xf32>
    %75 = vector.extract_strided_slice %32 {offsets = [16, 0], sizes = [2, 16], strides = [1, 1]} : vector<32x128xf32> to vector<2x16xf32>
    %76 = arith.truncf %75 : vector<2x16xf32> to vector<2x16xbf16>
    %77 = vector.extract_strided_slice %33 {offsets = [128, 0], sizes = [16, 128], strides = [1, 1]} : vector<256x128xbf16> to vector<16x128xbf16>
    %cst_30 = arith.constant dense<0.000000e+00> : vector<2x128xf32>
    %78 = tpu.matmul %76, %77, %cst_30 {dimension_numbers = #tpu.dot_dimension_numbers<[1], [0], [0], [1], [0, 0, 1, 1], [], []>} : vector<2x16xbf16>, vector<16x128xbf16>, vector<2x128xf32> -> vector<2x128xf32>
    %79 = arith.addf %74, %78 : vector<2x128xf32>
    %80 = vector.extract_strided_slice %32 {offsets = [18, 0], sizes = [2, 16], strides = [1, 1]} : vector<32x128xf32> to vector<2x16xf32>
    %81 = arith.truncf %80 : vector<2x16xf32> to vector<2x16xbf16>
    %82 = vector.extract_strided_slice %33 {offsets = [144, 0], sizes = [16, 128], strides = [1, 1]} : vector<256x128xbf16> to vector<16x128xbf16>
    %cst_31 = arith.constant dense<0.000000e+00> : vector<2x128xf32>
    %83 = tpu.matmul %81, %82, %cst_31 {dimension_numbers = #tpu.dot_dimension_numbers<[1], [0], [0], [1], [0, 0, 1, 1], [], []>} : vector<2x16xbf16>, vector<16x128xbf16>, vector<2x128xf32> -> vector<2x128xf32>
    %84 = arith.addf %79, %83 : vector<2x128xf32>
    %85 = vector.extract_strided_slice %32 {offsets = [20, 0], sizes = [2, 16], strides = [1, 1]} : vector<32x128xf32> to vector<2x16xf32>
    %86 = arith.truncf %85 : vector<2x16xf32> to vector<2x16xbf16>
    %87 = vector.extract_strided_slice %33 {offsets = [160, 0], sizes = [16, 128], strides = [1, 1]} : vector<256x128xbf16> to vector<16x128xbf16>
    %cst_32 = arith.constant dense<0.000000e+00> : vector<2x128xf32>
    %88 = tpu.matmul %86, %87, %cst_32 {dimension_numbers = #tpu.dot_dimension_numbers<[1], [0], [0], [1], [0, 0, 1, 1], [], []>} : vector<2x16xbf16>, vector<16x128xbf16>, vector<2x128xf32> -> vector<2x128xf32>
    %89 = arith.addf %84, %88 : vector<2x128xf32>
    %90 = vector.extract_strided_slice %32 {offsets = [22, 0], sizes = [2, 16], strides = [1, 1]} : vector<32x128xf32> to vector<2x16xf32>
    %91 = arith.truncf %90 : vector<2x16xf32> to vector<2x16xbf16>
    %92 = vector.extract_strided_slice %33 {offsets = [176, 0], sizes = [16, 128], strides = [1, 1]} : vector<256x128xbf16> to vector<16x128xbf16>
    %cst_33 = arith.constant dense<0.000000e+00> : vector<2x128xf32>
    %93 = tpu.matmul %91, %92, %cst_33 {dimension_numbers = #tpu.dot_dimension_numbers<[1], [0], [0], [1], [0, 0, 1, 1], [], []>} : vector<2x16xbf16>, vector<16x128xbf16>, vector<2x128xf32> -> vector<2x128xf32>
    %94 = arith.addf %89, %93 : vector<2x128xf32>
    %95 = vector.extract_strided_slice %32 {offsets = [24, 0], sizes = [2, 16], strides = [1, 1]} : vector<32x128xf32> to vector<2x16xf32>
    %96 = arith.truncf %95 : vector<2x16xf32> to vector<2x16xbf16>
    %97 = vector.extract_strided_slice %33 {offsets = [192, 0], sizes = [16, 128], strides = [1, 1]} : vector<256x128xbf16> to vector<16x128xbf16>
    %cst_34 = arith.constant dense<0.000000e+00> : vector<2x128xf32>
    %98 = tpu.matmul %96, %97, %cst_34 {dimension_numbers = #tpu.dot_dimension_numbers<[1], [0], [0], [1], [0, 0, 1, 1], [], []>} : vector<2x16xbf16>, vector<16x128xbf16>, vector<2x128xf32> -> vector<2x128xf32>
    %99 = arith.addf %94, %98 : vector<2x128xf32>
    %100 = vector.extract_strided_slice %32 {offsets = [26, 0], sizes = [2, 16], strides = [1, 1]} : vector<32x128xf32> to vector<2x16xf32>
    %101 = arith.truncf %100 : vector<2x16xf32> to vector<2x16xbf16>
    %102 = vector.extract_strided_slice %33 {offsets = [208, 0], sizes = [16, 128], strides = [1, 1]} : vector<256x128xbf16> to vector<16x128xbf16>
    %cst_35 = arith.constant dense<0.000000e+00> : vector<2x128xf32>
    %103 = tpu.matmul %101, %102, %cst_35 {dimension_numbers = #tpu.dot_dimension_numbers<[1], [0], [0], [1], [0, 0, 1, 1], [], []>} : vector<2x16xbf16>, vector<16x128xbf16>, vector<2x128xf32> -> vector<2x128xf32>
    %104 = arith.addf %99, %103 : vector<2x128xf32>
    %105 = vector.extract_strided_slice %32 {offsets = [28, 0], sizes = [2, 16], strides = [1, 1]} : vector<32x128xf32> to vector<2x16xf32>
    %106 = arith.truncf %105 : vector<2x16xf32> to vector<2x16xbf16>
    %107 = vector.extract_strided_slice %33 {offsets = [224, 0], sizes = [16, 128], strides = [1, 1]} : vector<256x128xbf16> to vector<16x128xbf16>
    %cst_36 = arith.constant dense<0.000000e+00> : vector<2x128xf32>
    %108 = tpu.matmul %106, %107, %cst_36 {dimension_numbers = #tpu.dot_dimension_numbers<[1], [0], [0], [1], [0, 0, 1, 1], [], []>} : vector<2x16xbf16>, vector<16x128xbf16>, vector<2x128xf32> -> vector<2x128xf32>
    %109 = arith.addf %104, %108 : vector<2x128xf32>
    %110 = vector.extract_strided_slice %32 {offsets = [30, 0], sizes = [2, 16], strides = [1, 1]} : vector<32x128xf32> to vector<2x16xf32>
    %111 = arith.truncf %110 : vector<2x16xf32> to vector<2x16xbf16>
    %112 = vector.extract_strided_slice %33 {offsets = [240, 0], sizes = [16, 128], strides = [1, 1]} : vector<256x128xbf16> to vector<16x128xbf16>
    %cst_37 = arith.constant dense<0.000000e+00> : vector<2x128xf32>
    %113 = tpu.matmul %111, %112, %cst_37 {dimension_numbers = #tpu.dot_dimension_numbers<[1], [0], [0], [1], [0, 0, 1, 1], [], []>} : vector<2x16xbf16>, vector<16x128xbf16>, vector<2x128xf32> -> vector<2x128xf32>
    %114 = arith.addf %109, %113 : vector<2x128xf32>
    %c0_38 = arith.constant 0 : index
    %c0_39 = arith.constant 0 : index
    %115 = vector.load %arg4[%c0_38, %c0_39] : memref<1x128xf32, #tpu.memory_space<vmem>>, vector<1x128xf32>
    %116 = vector.broadcast %115 : vector<1x128xf32> to vector<2x128xf32>
    %117 = arith.addf %114, %116 : vector<2x128xf32>
    %cst_40 = arith.constant 0.000000e+00 : f32
    %118 = vector.broadcast %cst_40 : f32 to vector<2x128xf32>
    %119 = arith.maximumf %117, %118 : vector<2x128xf32>
    %120 = arith.truncf %119 : vector<2x128xf32> to vector<2x128xbf16>
    %c0_41 = arith.constant 0 : index
    %c0_42 = arith.constant 0 : index
    %121 = vector.load %arg5[%c0_41, %c0_42] : memref<128x128xbf16, #tpu.memory_space<vmem>>, vector<128x128xbf16>
    %cst_43 = arith.constant dense<0.000000e+00> : vector<2x128xf32>
    %122 = tpu.matmul %120, %121, %cst_43 {dimension_numbers = #tpu.dot_dimension_numbers<[1], [0], [0], [1], [0, 0, 1, 1], [], []>} : vector<2x128xbf16>, vector<128x128xbf16>, vector<2x128xf32> -> vector<2x128xf32>
    %c0_44 = arith.constant 0 : index
    %c0_45 = arith.constant 0 : index
    %123 = vector.load %arg6[%c0_44, %c0_45] : memref<1x128xf32, #tpu.memory_space<vmem>>, vector<1x128xf32>
    %124 = vector.broadcast %123 : vector<1x128xf32> to vector<2x128xf32>
    %125 = arith.addf %122, %124 : vector<2x128xf32>
    %cst_46 = arith.constant 0.000000e+00 : f32
    %126 = vector.broadcast %cst_46 : f32 to vector<2x128xf32>
    %127 = arith.maximumf %125, %126 : vector<2x128xf32>
    %128 = arith.truncf %127 : vector<2x128xf32> to vector<2x128xbf16>
    %c0_47 = arith.constant 0 : index
    %c0_48 = arith.constant 0 : index
    %129 = vector.load %arg7[%c0_47, %c0_48] : memref<128x10xbf16, #tpu.memory_space<vmem>>, vector<128x10xbf16>
    %cst_49 = arith.constant dense<0.000000e+00> : vector<2x10xf32>
    %130 = tpu.matmul %128, %129, %cst_49 {dimension_numbers = #tpu.dot_dimension_numbers<[1], [0], [0], [1], [0, 0, 1, 1], [], []>} : vector<2x128xbf16>, vector<128x10xbf16>, vector<2x10xf32> -> vector<2x10xf32>
    %c0_50 = arith.constant 0 : index
    %c0_51 = arith.constant 0 : index
    %131 = vector.load %arg8[%c0_50, %c0_51] : memref<1x10xf32, #tpu.memory_space<vmem>>, vector<1x10xf32>
    %132 = vector.broadcast %131 : vector<1x10xf32> to vector<2x10xf32>
    %133 = arith.addf %130, %132 : vector<2x10xf32>
    %c0_52 = arith.constant 0 : index
    %c0_53 = arith.constant 0 : index
    %134 = vector.load %arg9[%c0_52, %c0_53] : memref<2x10xf32, #tpu.memory_space<vmem>>, vector<2x10xf32>
    tpu.vector_store %arg9[%c0_52, %c0_53], %133 {strides = array<i32>} : memref<2x10xf32, #tpu.memory_space<vmem>>, vector<2x10xf32>,
    return
  }
}

</mosaic_0001>

<llo_original>
// kernel: net_forward.2
$region0: #{net_forward.2}
  #allocation0 [shape = 'u32[]', space=smem, size = 0x4, offset = 0x4, fixed_abs, tag = 'smem constant byte address 0x4 - core index']
  #allocation1 [shape = 'u32[72,128]{1,0:T(1,128)}', space=vmem, size = 0x9000, scoped, tag = 'internal scratch']
  %s0 = inlined_call_operand.vmem [shape: bf16[4,288,75], index: 0, kind: input, shape index: {}]
  %s1 = inlined_call_operand.vmem [shape: bf16[75,6], index: 1, kind: input, shape index: {}]
  %s2 = inlined_call_operand.vmem [shape: f32[1,6], index: 2, kind: input, shape index: {}]
  %s3 = inlined_call_operand.vmem [shape: bf16[288,6], index: 3, kind: output, shape index: {}]
  %s4 = sld [smem:[#allocation0]]
  $region86: #{net_forward.2} parent=0
    _
  %s6 = ssub.s32 1, %s4
  %s7 = scalar_select 0, %s6, %s4
  $region1: #{net_forward.2} parent=0
    #allocation2 [shape = 'u8[294912]{0}', space=vmem, size = 0x48000, scoped, tag = 'input window, operand 0']
    loop: start=0, step=1, limit=4
    $region2: #{net_forward.2} parent=1 // loop_pre_header
      _
    $region3: #{net_forward.2} parent=1 // loop_header
      %s9 = sphi 0, %s13
      %p10 = scmp.ge.s32.totalorder %s9, 4
      %s19 = sphi 0, %s21
      %s22 = sphi 0, %s19
      %s23 = sphi 0, %s22
      %s39 = sphi 0, %s23
      %s43 = sphi 0, %s43
      %s45 = sphi 0, %s43
      %s46 = sphi 0, %s45
      %s60 = sphi 0, %s46
      %s64 = sphi 0, %s64
      %s66 = sphi 0, %s64
      %s67 = sphi 0, %s66
      %s81 = sphi 0, %s67
      %s87 = sphi 0, %s89
      %s90 = sphi 0, %s87
      %s91 = sphi 0, %s90
      %s107 = sphi 0, %s91
    $region4: #{net_forward.2} parent=1 // loop_header_branch
      %12 = sbr.rel (%p10) target = $region8
    $region5: #{net_forward.2} parent=1 // loop_body
      %s14 = ssub.s32 %s9, 1
      %s15 = ssub.s32 %s9, 2
      %s16 = sadd.s32 %s9, 1
      %s17 = ssub.s32 %s9, %s16
      %p18 = scmp.eq.s32.totalorder %s17, 0
      %s20 = sadd.s32 %s19, 1
      %s21 = scalar_select %p18, %s19, %s20
      %p24 = pneg %p18
      %p25 = scmp.eq.s32.totalorder %s9, 1
      %p26 = por %p24, %p25
      %p27 = scmp.ne.s32.totalorder %s19, %s22
      %p28 = scmp.eq.s32.totalorder %s9, 0
      %p29 = por %p27, %p28
      %p30 = scmp.ne.s32.totalorder %s19, %s22
      %p31 = scmp.eq.s32.totalorder %s14, 1
      %p32 = por %p30, %p31
      %p33 = scmp.ne.s32.totalorder %s22, %s23
      %p34 = scmp.eq.s32.totalorder %s14, 0
      %p35 = por %p33, %p34
      %p36 = scmp.ne.s32.totalorder %s22, %s23
      %p37 = scmp.eq.s32.totalorder %s15, 1
      %p38 = por %p36, %p37
      %p40 = scmp.ne.s32.totalorder %s23, %s39
      %p41 = scmp.eq.s32.totalorder %s15, 0
      %p42 = por %p40, %p41
      %s44 = sadd.s32 %s43, 1
      %p47 = scmp.eq.s32.totalorder %s9, 1
      %p48 = scmp.ne.s32.totalorder %s43, %s45
      %p49 = scmp.eq.s32.totalorder %s9, 0
      %p50 = por %p48, %p49
      %p51 = scmp.ne.s32.totalorder %s43, %s45
      %p52 = scmp.eq.s32.totalorder %s14, 1
      %p53 = por %p51, %p52
      %p54 = scmp.ne.s32.totalorder %s45, %s46
      %p55 = scmp.eq.s32.totalorder %s14, 0
      %p56 = por %p54, %p55
      %p57 = scmp.ne.s32.totalorder %s45, %s46
      %p58 = scmp.eq.s32.totalorder %s15, 1
      %p59 = por %p57, %p58
      %p61 = scmp.ne.s32.totalorder %s46, %s60
      %p62 = scmp.eq.s32.totalorder %s15, 0
      %p63 = por %p61, %p62
      %s65 = sadd.s32 %s64, 1
      %p68 = scmp.eq.s32.totalorder %s9, 1
      %p69 = scmp.ne.s32.totalorder %s64, %s66
      %p70 = scmp.eq.s32.totalorder %s9, 0
      %p71 = por %p69, %p70
      %p72 = scmp.ne.s32.totalorder %s64, %s66
      %p73 = scmp.eq.s32.totalorder %s14, 1
      %p74 = por %p72, %p73
      %p75 = scmp.ne.s32.totalorder %s66, %s67
      %p76 = scmp.eq.s32.totalorder %s14, 0
      %p77 = por %p75, %p76
      %p78 = scmp.ne.s32.totalorder %s66, %s67
      %p79 = scmp.eq.s32.totalorder %s15, 1
      %p80 = por %p78, %p79
      %p82 = scmp.ne.s32.totalorder %s67, %s81
      %p83 = scmp.eq.s32.totalorder %s15, 0
      %p84 = por %p82, %p83
      %s85 = ssub.s32 %s9, %s16
      %p86 = scmp.eq.s32.totalorder %s85, 0
      %s88 = sadd.s32 %s87, 1
      %s89 = scalar_select %p86, %s87, %s88
      %p92 = pneg %p86
      %p93 = scmp.eq.s32.totalorder %s9, 1
      %p94 = por %p92, %p93
      %p95 = scmp.ne.s32.totalorder %s87, %s90
      %p96 = scmp.eq.s32.totalorder %s9, 0
      %p97 = por %p95, %p96
      %p98 = scmp.ne.s32.totalorder %s87, %s90
      %p99 = scmp.eq.s32.totalorder %s14, 1
      %p100 = por %p98, %p99
      %p101 = scmp.ne.s32.totalorder %s90, %s91
      %p102 = scmp.eq.s32.totalorder %s14, 0
      %p103 = por %p101, %p102
      %p104 = scmp.ne.s32.totalorder %s90, %s91
      %p105 = scmp.eq.s32.totalorder %s15, 1
      %p106 = por %p104, %p105
      %p108 = scmp.ne.s32.totalorder %s91, %s107
      %p109 = scmp.eq.s32.totalorder %s15, 0
      %p110 = por %p108, %p109
      %p111 = scmp.le.s32.totalorder 1, %s9
      %p112 = scmp.lt.s32.totalorder %s9, 3
      %p113 = pnand %p111, %p112
      %p114 = pneg %p113
      // Predicated region
      $region9: #{net_forward.2} parent=5 // pred_check
        _
      $region10: #{net_forward.2} parent=5 // pred_check_branch
        %116 = sbr.rel (%p113) target = $region12
      $region11: #{net_forward.2} parent=5 // pred_region
        %s117 = ssub.s32 %s9, 1
        // Predicated region
        $region13: #{net_forward.2} parent=11 // pred_check
          %p118 = pneg %p56
        $region14: #{net_forward.2} parent=11 // pred_check_branch
          %120 = sbr.rel (%p118) target = $region16
        $region15: #{net_forward.2} parent=11 // pred_region
          _
        $region16: #{net_forward.2} parent=11 // pred_fallthru
          _
        // Predicated region
        $region17: #{net_forward.2} parent=11 // pred_check
          %p121 = pneg %p77
        $region18: #{net_forward.2} parent=11 // pred_check_branch
          %123 = sbr.rel (%p121) target = $region20
        $region19: #{net_forward.2} parent=11 // pred_region
          _
        $region20: #{net_forward.2} parent=11 // pred_fallthru
          _
      $region12: #{net_forward.2} parent=5 // pred_fallthru
        _
      %p124 = scmp.lt.s32.totalorder %s9, 2
      // Predicated region
      $region21: #{net_forward.2} parent=5 // pred_check
        %p125 = pneg %p124
      $region22: #{net_forward.2} parent=5 // pred_check_branch
        %127 = sbr.rel (%p125) target = $region24
      $region23: #{net_forward.2} parent=5 // pred_region
        // Predicated region
        $region25: #{net_forward.2} parent=23 // pred_check
          %p128 = pneg %p29
        $region26: #{net_forward.2} parent=23 // pred_check_branch
          %130 = sbr.rel (%p128) target = $region28
        $region27: #{net_forward.2} parent=23 // pred_region
          %s131 = sand.u32 %s19, 1
          %s132 = sand.u32 %s19, 1
          %s133 = smul.addr %s132, 288
          %s134 = scalar_lea.vmem [#allocation2], %s133
          %s135 = smul.u32 18, %s9
          %s136 = smul.addr %s135, 4
          %s137 = scalar_lea.vmem %s0, %s136
          // Predicated region
          $region29: #{net_forward.2} parent=27 // pred_check
            _
          $region30: #{net_forward.2} parent=27 // pred_check_branch
            %139 = sbr.rel (0) target = $region32
          $region31: #{net_forward.2} parent=27 // pred_region
            // Predicated region
            $region33: #{net_forward.2} parent=31 // pred_check
              _
            $region34: #{net_forward.2} parent=31 // pred_check_branch
              %141 = sbr.rel target = $region36
            $region35: #{net_forward.2} parent=31 // pred_region
              // Predicated region
              $region48: #{net_forward.2} parent=35 // pred_check
                _
              $region49: #{net_forward.2} parent=35 // pred_check_branch
                %299 = sbr.rel (0) target = $region51
              $region50: #{net_forward.2} parent=35 // pred_region
                loop: start=0, step=1, limit=1
                $region52: #{net_forward.2} parent=50 // loop_pre_header
                  _
                $region53: #{net_forward.2} parent=50 // loop_header
                  %s301 = sphi 0, %s305
                  %p302 = scmp.ge.s32.totalorder %s301, 1
                  %s306 = sphi %s137, %s137
                  %s307 = sphi %s134, %s134
                $region54: #{net_forward.2} parent=50 // loop_header_branch
                  %304 = sbr.rel (%p302) target = $region58
                $region55: #{net_forward.2} parent=50 // loop_body
                  _
                $region56: #{net_forward.2} parent=50 // loop_footer
                  %s305 = sadd.s32 1, %s301
                $region57: #{net_forward.2} parent=50 // loop_footer_branch
                  %300 = sbr.rel target = $region53
                $region58: #{net_forward.2} parent=50 // loop_exit
                  _
                %s309 = ssub.s32 16, 1
                loop: start=0, step=1, limit=1
                $region59: #{net_forward.2} parent=50 // loop_pre_header
                  _
                $region60: #{net_forward.2} parent=50 // loop_header
                  %s311 = sphi 0, %s315
                  %p312 = scmp.ge.s32.totalorder %s311, 1
                  %s316 = sphi %s137, %s137
                  %s317 = sphi %s134, %s134
                $region61: #{net_forward.2} parent=50 // loop_header_branch
                  %314 = sbr.rel (%p312) target = $region65
                $region62: #{net_forward.2} parent=50 // loop_body
                  %v318 = vld [vmem:[%s316] sm:%s309]
                  %319 = vst [vmem:[%s317] sm:%s309] %v318
                  %v320 = vld [vmem:[%s316 + $0x4] sm:%s309]
                  %321 = vst [vmem:[%s317 + $0x4] sm:%s309] %v320
                  %v322 = vld [vmem:[%s316 + $0x8] sm:%s309]
                  %323 = vst [vmem:[%s317 + $0x8] sm:%s309] %v322
                  %v324 = vld [vmem:[%s316 + $0xc] sm:%s309]
                  %325 = vst [vmem:[%s317 + $0xc] sm:%s309] %v324
                  %v326 = vld [vmem:[%s316 + $0x10] sm:%s309]
                  %327 = vst [vmem:[%s317 + $0x10] sm:%s309] %v326
                  %v328 = vld [vmem:[%s316 + $0x14] sm:%s309]
                  %329 = vst [vmem:[%s317 + $0x14] sm:%s309] %v328
                  %v330 = vld [vmem:[%s316 + $0x18] sm:%s309]
                  %331 = vst [vmem:[%s317 + $0x18] sm:%s309] %v330
                  %v332 = vld [vmem:[%s316 + $0x1c] sm:%s309]
                  %333 = vst [vmem:[%s317 + $0x1c] sm:%s309] %v332
                  %v334 = vld [vmem:[%s316 + $0x20] sm:%s309]
                  %335 = vst [vmem:[%s317 + $0x20] sm:%s309] %v334
                  %v336 = vld [vmem:[%s316 + $0x24] sm:%s309]
                  %337 = vst [vmem:[%s317 + $0x24] sm:%s309] %v336
                  %v338 = vld [vmem:[%s316 + $0x28] sm:%s309]
                  %339 = vst [vmem:[%s317 + $0x28] sm:%s309] %v338
                  %v340 = vld [vmem:[%s316 + $0x2c] sm:%s309]
                  %341 = vst [vmem:[%s317 + $0x2c] sm:%s309] %v340
                  %v342 = vld [vmem:[%s316 + $0x30] sm:%s309]
                  %343 = vst [vmem:[%s317 + $0x30] sm:%s309] %v342
                  %v344 = vld [vmem:[%s316 + $0x34] sm:%s309]
                  %345 = vst [vmem:[%s317 + $0x34] sm:%s309] %v344
                  %v346 = vld [vmem:[%s316 + $0x38] sm:%s309]
                  %347 = vst [vmem:[%s317 + $0x38] sm:%s309] %v346
                  %v348 = vld [vmem:[%s316 + $0x3c] sm:%s309]
                  %349 = vst [vmem:[%s317 + $0x3c] sm:%s309] %v348
                  %v350 = vld [vmem:[%s316 + $0x40] sm:%s309]
                  %351 = vst [vmem:[%s317 + $0x40] sm:%s309] %v350
                  %v352 = vld [vmem:[%s316 + $0x44] sm:%s309]
                  %353 = vst [vmem:[%s317 + $0x44] sm:%s309] %v352
                  %v354 = vld [vmem:[%s316 + $0x90] sm:%s309]
                  %355 = vst [vmem:[%s317 + $0x48] sm:%s309] %v354
                  %v356 = vld [vmem:[%s316 + $0x94] sm:%s309]
                  %357 = vst [vmem:[%s317 + $0x4c] sm:%s309] %v356
                  %v358 = vld [vmem:[%s316 + $0x98] sm:%s309]
                  %359 = vst [vmem:[%s317 + $0x50] sm:%s309] %v358
                  %v360 = vld [vmem:[%s316 + $0x9c] sm:%s309]
                  %361 = vst [vmem:[%s317 + $0x54] sm:%s309] %v360
                  %v362 = vld [vmem:[%s316 + $0xa0] sm:%s309]
                  %363 = vst [vmem:[%s317 + $0x58] sm:%s309] %v362
                  %v364 = vld [vmem:[%s316 + $0xa4] sm:%s309]
                  %365 = vst [vmem:[%s317 + $0x5c] sm:%s309] %v364
                  %v366 = vld [vmem:[%s316 + $0xa8] sm:%s309]
                  %367 = vst [vmem:[%s317 + $0x60] sm:%s309] %v366
                  %v368 = vld [vmem:[%s316 + $0xac] sm:%s309]
                  %369 = vst [vmem:[%s317 + $0x64] sm:%s309] %v368
                  %v370 = vld [vmem:[%s316 + $0xb0] sm:%s309]
                  %371 = vst [vmem:[%s317 + $0x68] sm:%s309] %v370
                  %v372 = vld [vmem:[%s316 + $0xb4] sm:%s309]
                  %373 = vst [vmem:[%s317 + $0x6c] sm:%s309] %v372
                  %v374 = vld [vmem:[%s316 + $0xb8] sm:%s309]
                  %375 = vst [vmem:[%s317 + $0x70] sm:%s309] %v374
                  %v376 = vld [vmem:[%s316 + $0xbc] sm:%s309]
                  %377 = vst [vmem:[%s317 + $0x74] sm:%s309] %v376
                  %v378 = vld [vmem:[%s316 + $0xc0] sm:%s309]
                  %379 = vst [vmem:[%s317 + $0x78] sm:%s309] %v378
                  %v380 = vld [vmem:[%s316 + $0xc4] sm:%s309]
                  %381 = vst [vmem:[%s317 + $0x7c] sm:%s309] %v380
                  %v382 = vld [vmem:[%s316 + $0xc8] sm:%s309]
                  %383 = vst [vmem:[%s317 + $0x80] sm:%s309] %v382
                  %v384 = vld [vmem:[%s316 + $0xcc] sm:%s309]
                  %385 = vst [vmem:[%s317 + $0x84] sm:%s309] %v384
                  %v386 = vld [vmem:[%s316 + $0xd0] sm:%s309]
                  %387 = vst [vmem:[%s317 + $0x88] sm:%s309] %v386
                  %v388 = vld [vmem:[%s316 + $0xd4] sm:%s309]
                  %389 = vst [vmem:[%s317 + $0x8c] sm:%s309] %v388
                  %v390 = vld [vmem:[%s316 + $0x120] sm:%s309]
                  %391 = vst [vmem:[%s317 + $0x90] sm:%s309] %v390
                  %v392 = vld [vmem:[%s316 + $0x124] sm:%s309]
                  %393 = vst [vmem:[%s317 + $0x94] sm:%s309] %v392
                  %v394 = vld [vmem:[%s316 + $0x128] sm:%s309]
                  %395 = vst [vmem:[%s317 + $0x98] sm:%s309] %v394
                  %v396 = vld [vmem:[%s316 + $0x12c] sm:%s309]
                  %397 = vst [vmem:[%s317 + $0x9c] sm:%s309] %v396
                  %v398 = vld [vmem:[%s316 + $0x130] sm:%s309]
                  %399 = vst [vmem:[%s317 + $0xa0] sm:%s309] %v398
                  %v400 = vld [vmem:[%s316 + $0x134] sm:%s309]
                  %401 = vst [vmem:[%s317 + $0xa4] sm:%s309] %v400
                  %v402 = vld [vmem:[%s316 + $0x138] sm:%s309]
                  %403 = vst [vmem:[%s317 + $0xa8] sm:%s309] %v402
                  %v404 = vld [vmem:[%s316 + $0x13c] sm:%s309]
                  %405 = vst [vmem:[%s317 + $0xac] sm:%s309] %v404
                  %v406 = vld [vmem:[%s316 + $0x140] sm:%s309]
                  %407 = vst [vmem:[%s317 + $0xb0] sm:%s309] %v406
                  %v408 = vld [vmem:[%s316 + $0x144] sm:%s309]
                  %409 = vst [vmem:[%s317 + $0xb4] sm:%s309] %v408
                  %v410 = vld [vmem:[%s316 + $0x148] sm:%s309]
                  %411 = vst [vmem:[%s317 + $0xb8] sm:%s309] %v410
                  %v412 = vld [vmem:[%s316 + $0x14c] sm:%s309]
                  %413 = vst [vmem:[%s317 + $0xbc] sm:%s309] %v412
                  %v414 = vld [vmem:[%s316 + $0x150] sm:%s309]
                  %415 = vst [vmem:[%s317 + $0xc0] sm:%s309] %v414
                  %v416 = vld [vmem:[%s316 + $0x154] sm:%s309]
                  %417 = vst [vmem:[%s317 + $0xc4] sm:%s309] %v416
                  %v418 = vld [vmem:[%s316 + $0x158] sm:%s309]
                  %419 = vst [vmem:[%s317 + $0xc8] sm:%s309] %v418
                  %v420 = vld [vmem:[%s316 + $0x15c] sm:%s309]
                  %421 = vst [vmem:[%s317 + $0xcc] sm:%s309] %v420
                  %v422 = vld [vmem:[%s316 + $0x160] sm:%s309]
                  %423 = vst [vmem:[%s317 + $0xd0] sm:%s309] %v422
                  %v424 = vld [vmem:[%s316 + $0x164] sm:%s309]
                  %425 = vst [vmem:[%s317 + $0xd4] sm:%s309] %v424
                  %v426 = vld [vmem:[%s316 + $0x1b0] sm:%s309]
                  %427 = vst [vmem:[%s317 + $0xd8] sm:%s309] %v426
                  %v428 = vld [vmem:[%s316 + $0x1b4] sm:%s309]
                  %429 = vst [vmem:[%s317 + $0xdc] sm:%s309] %v428
                  %v430 = vld [vmem:[%s316 + $0x1b8] sm:%s309]
                  %431 = vst [vmem:[%s317 + $0xe0] sm:%s309] %v430
                  %v432 = vld [vmem:[%s316 + $0x1bc] sm:%s309]
                  %433 = vst [vmem:[%s317 + $0xe4] sm:%s309] %v432
                  %v434 = vld [vmem:[%s316 + $0x1c0] sm:%s309]
                  %435 = vst [vmem:[%s317 + $0xe8] sm:%s309] %v434
                  %v436 = vld [vmem:[%s316 + $0x1c4] sm:%s309]
                  %437 = vst [vmem:[%s317 + $0xec] sm:%s309] %v436
                  %v438 = vld [vmem:[%s316 + $0x1c8] sm:%s309]
                  %439 = vst [vmem:[%s317 + $0xf0] sm:%s309] %v438
                  %v440 = vld [vmem:[%s316 + $0x1cc] sm:%s309]
                  %441 = vst [vmem:[%s317 + $0xf4] sm:%s309] %v440
                  %v442 = vld [vmem:[%s316 + $0x1d0] sm:%s309]
                  %443 = vst [vmem:[%s317 + $0xf8] sm:%s309] %v442
                  %v444 = vld [vmem:[%s316 + $0x1d4] sm:%s309]
                  %445 = vst [vmem:[%s317 + $0xfc] sm:%s309] %v444
                  %v446 = vld [vmem:[%s316 + $0x1d8] sm:%s309]
                  %447 = vst [vmem:[%s317 + $0x100] sm:%s309] %v446
                  %v448 = vld [vmem:[%s316 + $0x1dc] sm:%s309]
                  %449 = vst [vmem:[%s317 + $0x104] sm:%s309] %v448
                  %v450 = vld [vmem:[%s316 + $0x1e0] sm:%s309]
                  %451 = vst [vmem:[%s317 + $0x108] sm:%s309] %v450
                  %v452 = vld [vmem:[%s316 + $0x1e4] sm:%s309]
                  %453 = vst [vmem:[%s317 + $0x10c] sm:%s309] %v452
                  %v454 = vld [vmem:[%s316 + $0x1e8] sm:%s309]
                  %455 = vst [vmem:[%s317 + $0x110] sm:%s309] %v454
                  %v456 = vld [vmem:[%s316 + $0x1ec] sm:%s309]
                  %457 = vst [vmem:[%s317 + $0x114] sm:%s309] %v456
                  %v458 = vld [vmem:[%s316 + $0x1f0] sm:%s309]
                  %459 = vst [vmem:[%s317 + $0x118] sm:%s309] %v458
                  %v460 = vld [vmem:[%s316 + $0x1f4] sm:%s309]
                  %461 = vst [vmem:[%s317 + $0x11c] sm:%s309] %v460
                $region63: #{net_forward.2} parent=50 // loop_footer
                  %s315 = sadd.s32 1, %s311
                $region64: #{net_forward.2} parent=50 // loop_footer_branch
                  %310 = sbr.rel target = $region60
                $region65: #{net_forward.2} parent=50 // loop_exit
                  _
              $region51: #{net_forward.2} parent=35 // pred_fallthru
                _
            $region36: #{net_forward.2} parent=31 // pred_fallthru
              _
            // Predicated region
            $region37: #{net_forward.2} parent=31 // pred_check
              _
            $region38: #{net_forward.2} parent=31 // pred_check_branch
              %143 = sbr.rel (0) target = $region40
            $region39: #{net_forward.2} parent=31 // pred_region
              %s145 = ssub.s32 16, 1
              loop: start=0, step=1, limit=1
              $region41: #{net_forward.2} parent=39 // loop_pre_header
                _
              $region42: #{net_forward.2} parent=39 // loop_header
                %s147 = sphi 0, %s151
                %p148 = scmp.ge.s32.totalorder %s147, 1
                %s152 = sphi %s137, %s137
                %s153 = sphi %s134, %s134
              $region43: #{net_forward.2} parent=39 // loop_header_branch
                %150 = sbr.rel (%p148) target = $region47
              $region44: #{net_forward.2} parent=39 // loop_body
                %v154 = vld [vmem:[%s152] sm:%s145]
                %155 = vst [vmem:[%s153] sm:%s145] %v154
                %v156 = vld [vmem:[%s152 + $0x4] sm:%s145]
                %157 = vst [vmem:[%s153 + $0x4] sm:%s145] %v156
                %v158 = vld [vmem:[%s152 + $0x8] sm:%s145]
                %159 = vst [vmem:[%s153 + $0x8] sm:%s145] %v158
                %v160 = vld [vmem:[%s152 + $0xc] sm:%s145]
                %161 = vst [vmem:[%s153 + $0xc] sm:%s145] %v160
                %v162 = vld [vmem:[%s152 + $0x10] sm:%s145]
                %163 = vst [vmem:[%s153 + $0x10] sm:%s145] %v162
                %v164 = vld [vmem:[%s152 + $0x14] sm:%s145]
                %165 = vst [vmem:[%s153 + $0x14] sm:%s145] %v164
                %v166 = vld [vmem:[%s152 + $0x18] sm:%s145]
                %167 = vst [vmem:[%s153 + $0x18] sm:%s145] %v166
                %v168 = vld [vmem:[%s152 + $0x1c] sm:%s145]
                %169 = vst [vmem:[%s153 + $0x1c] sm:%s145] %v168
                %v170 = vld [vmem:[%s152 + $0x20] sm:%s145]
                %171 = vst [vmem:[%s153 + $0x20] sm:%s145] %v170
                %v172 = vld [vmem:[%s152 + $0x24] sm:%s145]
                %173 = vst [vmem:[%s153 + $0x24] sm:%s145] %v172
                %v174 = vld [vmem:[%s152 + $0x28] sm:%s145]
                %175 = vst [vmem:[%s153 + $0x28] sm:%s145] %v174
                %v176 = vld [vmem:[%s152 + $0x2c] sm:%s145]
                %177 = vst [vmem:[%s153 + $0x2c] sm:%s145] %v176
                %v178 = vld [vmem:[%s152 + $0x30] sm:%s145]
                %179 = vst [vmem:[%s153 + $0x30] sm:%s145] %v178
                %v180 = vld [vmem:[%s152 + $0x34] sm:%s145]
                %181 = vst [vmem:[%s153 + $0x34] sm:%s145] %v180
                %v182 = vld [vmem:[%s152 + $0x38] sm:%s145]
                %183 = vst [vmem:[%s153 + $0x38] sm:%s145] %v182
                %v184 = vld [vmem:[%s152 + $0x3c] sm:%s145]
                %185 = vst [vmem:[%s153 + $0x3c] sm:%s145] %v184
                %v186 = vld [vmem:[%s152 + $0x40] sm:%s145]
                %187 = vst [vmem:[%s153 + $0x40] sm:%s145] %v186
                %v188 = vld [vmem:[%s152 + $0x44] sm:%s145]
                %189 = vst [vmem:[%s153 + $0x44] sm:%s145] %v188
                %v190 = vld [vmem:[%s152 + $0x90] sm:%s145]
                %191 = vst [vmem:[%s153 + $0x48] sm:%s145] %v190
                %v192 = vld [vmem:[%s152 + $0x94] sm:%s145]
                %193 = vst [vmem:[%s153 + $0x4c] sm:%s145] %v192
                %v194 = vld [vmem:[%s152 + $0x98] sm:%s145]
                %195 = vst [vmem:[%s153 + $0x50] sm:%s145] %v194
                %v196 = vld [vmem:[%s152 + $0x9c] sm:%s145]
                %197 = vst [vmem:[%s153 + $0x54] sm:%s145] %v196
                %v198 = vld [vmem:[%s152 + $0xa0] sm:%s145]
                %199 = vst [vmem:[%s153 + $0x58] sm:%s145] %v198
                %v200 = vld [vmem:[%s152 + $0xa4] sm:%s145]
                %201 = vst [vmem:[%s153 + $0x5c] sm:%s145] %v200
                %v202 = vld [vmem:[%s152 + $0xa8] sm:%s145]
                %203 = vst [vmem:[%s153 + $0x60] sm:%s145] %v202
                %v204 = vld [vmem:[%s152 + $0xac] sm:%s145]
                %205 = vst [vmem:[%s153 + $0x64] sm:%s145] %v204
                %v206 = vld [vmem:[%s152 + $0xb0] sm:%s145]
                %207 = vst [vmem:[%s153 + $0x68] sm:%s145] %v206
                %v208 = vld [vmem:[%s152 + $0xb4] sm:%s145]
                %209 = vst [vmem:[%s153 + $0x6c] sm:%s145] %v208
                %v210 = vld [vmem:[%s152 + $0xb8] sm:%s145]
                %211 = vst [vmem:[%s153 + $0x70] sm:%s145] %v210
                %v212 = vld [vmem:[%s152 + $0xbc] sm:%s145]
                %213 = vst [vmem:[%s153 + $0x74] sm:%s145] %v212
                %v214 = vld [vmem:[%s152 + $0xc0] sm:%s145]
                %215 = vst [vmem:[%s153 + $0x78] sm:%s145] %v214
                %v216 = vld [vmem:[%s152 + $0xc4] sm:%s145]
                %217 = vst [vmem:[%s153 + $0x7c] sm:%s145] %v216
                %v218 = vld [vmem:[%s152 + $0xc8] sm:%s145]
                %219 = vst [vmem:[%s153 + $0x80] sm:%s145] %v218
                %v220 = vld [vmem:[%s152 + $0xcc] sm:%s145]
                %221 = vst [vmem:[%s153 + $0x84] sm:%s145] %v220
                %v222 = vld [vmem:[%s152 + $0xd0] sm:%s145]
                %223 = vst [vmem:[%s153 + $0x88] sm:%s145] %v222
                %v224 = vld [vmem:[%s152 + $0xd4] sm:%s145]
                %225 = vst [vmem:[%s153 + $0x8c] sm:%s145] %v224
                %v226 = vld [vmem:[%s152 + $0x120] sm:%s145]
                %227 = vst [vmem:[%s153 + $0x90] sm:%s145] %v226
                %v228 = vld [vmem:[%s152 + $0x124] sm:%s145]
                %229 = vst [vmem:[%s153 + $0x94] sm:%s145] %v228
                %v230 = vld [vmem:[%s152 + $0x128] sm:%s145]
                %231 = vst [vmem:[%s153 + $0x98] sm:%s145] %v230
                %v232 = vld [vmem:[%s152 + $0x12c] sm:%s145]
                %233 = vst [vmem:[%s153 + $0x9c] sm:%s145] %v232
                %v234 = vld [vmem:[%s152 + $0x130] sm:%s145]
                %235 = vst [vmem:[%s153 + $0xa0] sm:%s145] %v234
                %v236 = vld [vmem:[%s152 + $0x134] sm:%s145]
                %237 = vst [vmem:[%s153 + $0xa4] sm:%s145] %v236
                %v238 = vld [vmem:[%s152 + $0x138] sm:%s145]
                %239 = vst [vmem:[%s153 + $0xa8] sm:%s145] %v238
                %v240 = vld [vmem:[%s152 + $0x13c] sm:%s145]
                %241 = vst [vmem:[%s153 + $0xac] sm:%s145] %v240
                %v242 = vld [vmem:[%s152 + $0x140] sm:%s145]
                %243 = vst [vmem:[%s153 + $0xb0] sm:%s145] %v242
                %v244 = vld [vmem:[%s152 + $0x144] sm:%s145]
                %245 = vst [vmem:[%s153 + $0xb4] sm:%s145] %v244
                %v246 = vld [vmem:[%s152 + $0x148] sm:%s145]
                %247 = vst [vmem:[%s153 + $0xb8] sm:%s145] %v246
                %v248 = vld [vmem:[%s152 + $0x14c] sm:%s145]
                %249 = vst [vmem:[%s153 + $0xbc] sm:%s145] %v248
                %v250 = vld [vmem:[%s152 + $0x150] sm:%s145]
                %251 = vst [vmem:[%s153 + $0xc0] sm:%s145] %v250
                %v252 = vld [vmem:[%s152 + $0x154] sm:%s145]
                %253 = vst [vmem:[%s153 + $0xc4] sm:%s145] %v252
                %v254 = vld [vmem:[%s152 + $0x158] sm:%s145]
                %255 = vst [vmem:[%s153 + $0xc8] sm:%s145] %v254
                %v256 = vld [vmem:[%s152 + $0x15c] sm:%s145]
                %257 = vst [vmem:[%s153 + $0xcc] sm:%s145] %v256
                %v258 = vld [vmem:[%s152 + $0x160] sm:%s145]
                %259 = vst [vmem:[%s153 + $0xd0] sm:%s145] %v258
                %v260 = vld [vmem:[%s152 + $0x164] sm:%s145]
                %261 = vst [vmem:[%s153 + $0xd4] sm:%s145] %v260
                %v262 = vld [vmem:[%s152 + $0x1b0] sm:%s145]
                %263 = vst [vmem:[%s153 + $0xd8] sm:%s145] %v262
                %v264 = vld [vmem:[%s152 + $0x1b4] sm:%s145]
                %265 = vst [vmem:[%s153 + $0xdc] sm:%s145] %v264
                %v266 = vld [vmem:[%s152 + $0x1b8] sm:%s145]
                %267 = vst [vmem:[%s153 + $0xe0] sm:%s145] %v266
                %v268 = vld [vmem:[%s152 + $0x1bc] sm:%s145]
                %269 = vst [vmem:[%s153 + $0xe4] sm:%s145] %v268
                %v270 = vld [vmem:[%s152 + $0x1c0] sm:%s145]
                %271 = vst [vmem:[%s153 + $0xe8] sm:%s145] %v270
                %v272 = vld [vmem:[%s152 + $0x1c4] sm:%s145]
                %273 = vst [vmem:[%s153 + $0xec] sm:%s145] %v272
                %v274 = vld [vmem:[%s152 + $0x1c8] sm:%s145]
                %275 = vst [vmem:[%s153 + $0xf0] sm:%s145] %v274
                %v276 = vld [vmem:[%s152 + $0x1cc] sm:%s145]
                %277 = vst [vmem:[%s153 + $0xf4] sm:%s145] %v276
                %v278 = vld [vmem:[%s152 + $0x1d0] sm:%s145]
                %279 = vst [vmem:[%s153 + $0xf8] sm:%s145] %v278
                %v280 = vld [vmem:[%s152 + $0x1d4] sm:%s145]
                %281 = vst [vmem:[%s153 + $0xfc] sm:%s145] %v280
                %v282 = vld [vmem:[%s152 + $0x1d8] sm:%s145]
                %283 = vst [vmem:[%s153 + $0x100] sm:%s145] %v282
                %v284 = vld [vmem:[%s152 + $0x1dc] sm:%s145]
                %285 = vst [vmem:[%s153 + $0x104] sm:%s145] %v284
                %v286 = vld [vmem:[%s152 + $0x1e0] sm:%s145]
                %287 = vst [vmem:[%s153 + $0x108] sm:%s145] %v286
                %v288 = vld [vmem:[%s152 + $0x1e4] sm:%s145]
                %289 = vst [vmem:[%s153 + $0x10c] sm:%s145] %v288
                %v290 = vld [vmem:[%s152 + $0x1e8] sm:%s145]
                %291 = vst [vmem:[%s153 + $0x110] sm:%s145] %v290
                %v292 = vld [vmem:[%s152 + $0x1ec] sm:%s145]
                %293 = vst [vmem:[%s153 + $0x114] sm:%s145] %v292
                %v294 = vld [vmem:[%s152 + $0x1f0] sm:%s145]
                %295 = vst [vmem:[%s153 + $0x118] sm:%s145] %v294
                %v296 = vld [vmem:[%s152 + $0x1f4] sm:%s145]
                %297 = vst [vmem:[%s153 + $0x11c] sm:%s145] %v296
              $region45: #{net_forward.2} parent=39 // loop_footer
                %s151 = sadd.s32 1, %s147
              $region46: #{net_forward.2} parent=39 // loop_footer_branch
                %146 = sbr.rel target = $region42
              $region47: #{net_forward.2} parent=39 // loop_exit
                _
            $region40: #{net_forward.2} parent=31 // pred_fallthru
              _
          $region32: #{net_forward.2} parent=27 // pred_fallthru
            _
          %462 = vnop
        $region28: #{net_forward.2} parent=23 // pred_fallthru
          _
      $region24: #{net_forward.2} parent=5 // pred_fallthru
        _
      %p463 = scmp.le.s32.totalorder 1, %s9
      %p464 = scmp.lt.s32.totalorder %s9, 3
      %p465 = pnand %p463, %p464
      %p466 = pneg %p465
      // Predicated region
      $region66: #{net_forward.2} parent=5 // pred_check
        _
      $region67: #{net_forward.2} parent=5 // pred_check_branch
        %468 = sbr.rel (%p465) target = $region69
      $region68: #{net_forward.2} parent=5 // pred_region
        %s469 = ssub.s32 %s9, 1
        %s470 = sand.u32 %s22, 1
        %s471 = sand.u32 %s22, 1
        %s472 = smul.addr %s471, 288
        %s473 = scalar_lea.vmem [#allocation2], %s472
        // Predicated region
        $region70: #{net_forward.2} parent=68 // pred_check
          %p474 = pneg %p35
        $region71: #{net_forward.2} parent=68 // pred_check_branch
          %476 = sbr.rel (%p474) target = $region73
        $region72: #{net_forward.2} parent=68 // pred_region
          _
        $region73: #{net_forward.2} parent=68 // pred_fallthru
          _
        %s477 = sand.u32 %s22, 1
        %s478 = sand.u32 %s22, 1
        %s479 = smul.addr %s478, 288
        %s480 = scalar_lea.vmem [#allocation2], %s479
        %p481 = pneg %p35
        %p482 = pneg %p32
        %p483 = pneg %p56
        %p484 = pneg %p53
        %p485 = pneg %p77
        %p486 = pneg %p74
        %p487 = pneg %p103
        %p488 = pneg %p100
        %s489 = smul.u32 18, %s14
        %p490 = scmp.lt.s32.totalorder %s489, 35
        %s491 = scalar_select %p490, %s489, 35
        %s492 = smul.addr %s491, 4
        %s493 = scalar_lea.vmem %s3, %s492
        %s494 = smul.u32 18, %s14
        %s495 = smul.u32 18, %s14
        %p496 = scmp.lt.s32.totalorder %s495, 35
        %s497 = scalar_select %p496, %s495, 35
        %s498 = smul.addr %s497, 4
        %s499 = scalar_lea.vmem %s3, %s498
        %s500 = smul.u32 18, %s14
        %v502 = vld [vmem:[%s1] sm:$0xf]
        %v503 = vld [vmem:[%s1 + $0x4] sm:$0xf]
        %v504 = vld [vmem:[%s1 + $0x8] sm:$0xf]
        %v505 = vld [vmem:[%s1 + $0xc] sm:$0xf]
        %v506 = vld [vmem:[%s1 + $0x10] sm:$0xf]
        %v507 = vld [vmem:[%s1 + $0x14] sm:$0xf]
        %v508 = vld [vmem:[%s1 + $0x18] sm:$0xf]
        %v509 = vld [vmem:[%s1 + $0x1c] sm:$0xf]
        %v510 = vld [vmem:[%s1 + $0x20] sm:$0xf]
        %v511 = vld [vmem:[%s1 + $0x24] sm:$0x3]
        %v512 = vld [vmem:[%s2] sm:$0x1]
        %v513 = vld [vmem:[%s473] sm:$0xf]
        %v514 = vld [vmem:[%s473 + $0x4] sm:$0xf]
        %v515 = vld [vmem:[%s473 + $0x8] sm:$0xf]
        %v516 = vld [vmem:[%s473 + $0xc] sm:$0xf]
        %v517 = vld [vmem:[%s473 + $0x10] sm:$0xf]
        %v518 = vld [vmem:[%s473 + $0x14] sm:$0xf]
        %v519 = vld [vmem:[%s473 + $0x18] sm:$0xf]
        %v520 = vld [vmem:[%s473 + $0x1c] sm:$0xf]
        %v521 = vld [vmem:[%s473 + $0x20] sm:$0xf]
        %v522 = vld [vmem:[%s473 + $0x24] sm:$0xf]
        %v523 = vld [vmem:[%s473 + $0x28] sm:$0xf]
        %v524 = vld [vmem:[%s473 + $0x2c] sm:$0xf]
        %v525 = vld [vmem:[%s473 + $0x30] sm:$0xf]
        %v526 = vld [vmem:[%s473 + $0x34] sm:$0xf]
        %v527 = vld [vmem:[%s473 + $0x38] sm:$0xf]
        %v528 = vld [vmem:[%s473 + $0x3c] sm:$0xf]
        %v529 = vld [vmem:[%s473 + $0x40] sm:$0xf]
        %v530 = vld [vmem:[%s473 + $0x44] sm:$0xf]
        %v532 = vperm.slane %v512, 0
        %v552 = vunpack.c.l.b16 %v513
        %v553 = vunpack.c.l.b16 %v514
        %v554 = vunpack.c.l.b16 %v515
        %v555 = vunpack.c.l.b16 %v516
        %v556 = vunpack.c.l.b16 %v517
        %v557 = vunpack.c.l.b16 %v518
        %v558 = vunpack.c.l.b16 %v519
        %v559 = vunpack.c.l.b16 %v520
        %v560 = vunpack.c.l.b16 %v521
        %v561 = vunpack.c.l.b16 %v522
        %v562 = vunpack.c.l.b16 %v523
        %v563 = vunpack.c.l.b16 %v524
        %v564 = vunpack.c.l.b16 %v525
        %v565 = vunpack.c.l.b16 %v526
        %v566 = vunpack.c.l.b16 %v527
        %v567 = vunpack.c.l.b16 %v528
        %v568 = vunpack.c.l.b16 %v529
        %v569 = vunpack.c.l.b16 %v530
        %v570 = vpack.c.b16 %v553, %v552
        %v571 = vpack.c.b16 %v555, %v554
        %v572 = vpack.c.b16 %v557, %v556
        %v573 = vpack.c.b16 %v559, %v558
        %v574 = vpack.c.b16 %v561, %v560
        %v575 = vpack.c.b16 %v563, %v562
        %v576 = vpack.c.b16 %v565, %v564
        %v577 = vpack.c.b16 %v567, %v566
        %v578 = vpack.c.b16 %v569, %v568
        %v589 = vunpack.c.l.b16 %v502
        %v590 = vunpack.c.l.b16 %v503
        %v591 = vunpack.c.l.b16 %v504
        %v592 = vunpack.c.l.b16 %v505
        %v593 = vunpack.c.l.b16 %v506
        %v594 = vunpack.c.l.b16 %v507
        %v595 = vunpack.c.l.b16 %v508
        %v596 = vunpack.c.l.b16 %v509
        %v597 = vunpack.c.l.b16 %v510
        %v598 = vunpack.c.l.b16 %v511
        %v599 = vpack.c.b16 %v590, %v589
        %v600 = vpack.c.b16 %v592, %v591
        %v601 = vpack.c.b16 %v594, %v593
        %v602 = vpack.c.b16 %v596, %v595
        %v603 = vpack.c.b16 %v598, %v597
        %vm608 = vcmask 613376
        %v610 = vsel %vm608, %v570, 0
        %v613 = vsel %vm608, %v571, 0
        %v616 = vsel %vm608, %v572, 0
        %v619 = vsel %vm608, %v573, 0
        %v622 = vsel %vm608, %v574, 0
        %v625 = vsel %vm608, %v575, 0
        %v628 = vsel %vm608, %v576, 0
        %v631 = vsel %vm608, %v577, 0
        %v634 = vsel %vm608, %v578, 0
        %vm636 = vcmask 1044480
        %vm637 = vcmask 1045504
        %v638 = vsel %vm636, 4294967295, 65535
        %v639 = vsel %vm637, %v638, 0
        %v641 = vand.u32 %v603, %v639
        %643 = vmatpush.bf16.msra.mxu0 0
        %644 = vmatpush.bf16.msra.mxu0 0
        %645 = vmatpush.bf16.msra.mxu0 0
        %646 = vmatpush.bf16.msra.mxu0 %v641
        %647 = vmatpush.bf16.msra.mxu0 %v602
        %648 = vmatpush.bf16.msra.mxu0 %v601
        %649 = vmatpush.bf16.msra.mxu0 %v600
        %650 = vmatpush.bf16.msra.mxu0 %v599
        %651 = vmatmul.bf16.gmra.mxu0 %v610
        %v652 = vpop.f32.mrf.mxu0
        %v653 = vadd.f32 %v532, %v652
        %v654 = vpop.f32.mrf.mxu0
        %v655 = vadd.f32 %v532, %v654
        %656 = vmatmul.bf16.gmra.mxu0 %v613
        %v657 = vpop.f32.mrf.mxu0
        %v658 = vadd.f32 %v532, %v657
        %v659 = vpop.f32.mrf.mxu0
        %v660 = vadd.f32 %v532, %v659
        %661 = vmatmul.bf16.gmra.mxu0 %v616
        %v662 = vpop.f32.mrf.mxu0
        %v663 = vadd.f32 %v532, %v662
        %v664 = vpop.f32.mrf.mxu0
        %v665 = vadd.f32 %v532, %v664
        %666 = vmatmul.bf16.gmra.mxu0 %v619
        %v667 = vpop.f32.mrf.mxu0
        %v668 = vadd.f32 %v532, %v667
        %v669 = vpop.f32.mrf.mxu0
        %v670 = vadd.f32 %v532, %v669
        %671 = vmatmul.bf16.gmra.mxu0 %v622
        %v672 = vpop.f32.mrf.mxu0
        %v673 = vadd.f32 %v532, %v672
        %v674 = vpop.f32.mrf.mxu0
        %v675 = vadd.f32 %v532, %v674
        %676 = vmatmul.bf16.gmra.mxu0 %v625
        %v677 = vpop.f32.mrf.mxu0
        %v678 = vadd.f32 %v532, %v677
        %v679 = vpop.f32.mrf.mxu0
        %v680 = vadd.f32 %v532, %v679
        %681 = vmatmul.bf16.gmra.mxu0 %v628
        %v682 = vpop.f32.mrf.mxu0
        %v683 = vadd.f32 %v532, %v682
        %v684 = vpop.f32.mrf.mxu0
        %v685 = vadd.f32 %v532, %v684
        %686 = vmatmul.bf16.gmra.mxu0 %v631
        %v687 = vpop.f32.mrf.mxu0
        %v688 = vadd.f32 %v532, %v687
        %v689 = vpop.f32.mrf.mxu0
        %v690 = vadd.f32 %v532, %v689
        %691 = vmatmul.bf16.gmra.mxu0 %v634
        %v692 = vpop.f32.mrf.mxu0
        %v693 = vadd.f32 %v532, %v692
        %v694 = vpop.f32.mrf.mxu0
        %v695 = vadd.f32 %v532, %v694
        %696 = vdwg.mxu0
        %v697 = vmax.f32 %v653, 0.0
        %v698 = vmax.f32 %v655, 0.0
        %v699 = vmax.f32 %v658, 0.0
        %v700 = vmax.f32 %v660, 0.0
        %v701 = vmax.f32 %v663, 0.0
        %v702 = vmax.f32 %v665, 0.0
        %v703 = vmax.f32 %v668, 0.0
        %v704 = vmax.f32 %v670, 0.0
        %v705 = vmax.f32 %v673, 0.0
        %v706 = vmax.f32 %v675, 0.0
        %v707 = vmax.f32 %v678, 0.0
        %v708 = vmax.f32 %v680, 0.0
        %v709 = vmax.f32 %v683, 0.0
        %v710 = vmax.f32 %v685, 0.0
        %v711 = vmax.f32 %v688, 0.0
        %v712 = vmax.f32 %v690, 0.0
        %v713 = vmax.f32 %v693, 0.0
        %v714 = vmax.f32 %v695, 0.0
        %s715 = scalar_lea.vmem %s473, 72 [#allocation2]
        %v716 = vld [vmem:[%s715] sm:$0xf]
        %v717 = vld [vmem:[%s715 + $0x4] sm:$0xf]
        %v718 = vld [vmem:[%s715 + $0x8] sm:$0xf]
        %v719 = vld [vmem:[%s715 + $0xc] sm:$0xf]
        %v720 = vld [vmem:[%s715 + $0x10] sm:$0xf]
        %v721 = vld [vmem:[%s715 + $0x14] sm:$0xf]
        %v722 = vld [vmem:[%s715 + $0x18] sm:$0xf]
        %v723 = vld [vmem:[%s715 + $0x1c] sm:$0xf]
        %v724 = vld [vmem:[%s715 + $0x20] sm:$0xf]
        %v725 = vld [vmem:[%s715 + $0x24] sm:$0xf]
        %v726 = vld [vmem:[%s715 + $0x28] sm:$0xf]
        %v727 = vld [vmem:[%s715 + $0x2c] sm:$0xf]
        %v728 = vld [vmem:[%s715 + $0x30] sm:$0xf]
        %v729 = vld [vmem:[%s715 + $0x34] sm:$0xf]
        %v730 = vld [vmem:[%s715 + $0x38] sm:$0xf]
        %v731 = vld [vmem:[%s715 + $0x3c] sm:$0xf]
        %v732 = vld [vmem:[%s715 + $0x40] sm:$0xf]
        %v733 = vld [vmem:[%s715 + $0x44] sm:$0xf]
        %v752 = vunpack.c.l.b16 %v716
        %v753 = vunpack.c.l.b16 %v717
        %v754 = vunpack.c.l.b16 %v718
        %v755 = vunpack.c.l.b16 %v719
        %v756 = vunpack.c.l.b16 %v720
        %v757 = vunpack.c.l.b16 %v721
        %v758 = vunpack.c.l.b16 %v722
        %v759 = vunpack.c.l.b16 %v723
        %v760 = vunpack.c.l.b16 %v724
        %v761 = vunpack.c.l.b16 %v725
        %v762 = vunpack.c.l.b16 %v726
        %v763 = vunpack.c.l.b16 %v727
        %v764 = vunpack.c.l.b16 %v728
        %v765 = vunpack.c.l.b16 %v729
        %v766 = vunpack.c.l.b16 %v730
        %v767 = vunpack.c.l.b16 %v731
        %v768 = vunpack.c.l.b16 %v732
        %v769 = vunpack.c.l.b16 %v733
        %v770 = vpack.c.b16 %v753, %v752
        %v771 = vpack.c.b16 %v755, %v754
        %v772 = vpack.c.b16 %v757, %v756
        %v773 = vpack.c.b16 %v759, %v758
        %v774 = vpack.c.b16 %v761, %v760
        %v775 = vpack.c.b16 %v763, %v762
        %v776 = vpack.c.b16 %v765, %v764
        %v777 = vpack.c.b16 %v767, %v766
        %v778 = vpack.c.b16 %v769, %v768
        %v780 = vsel %vm608, %v770, 0
        %v783 = vsel %vm608, %v771, 0
        %v786 = vsel %vm608, %v772, 0
        %v789 = vsel %vm608, %v773, 0
        %v792 = vsel %vm608, %v774, 0
        %v795 = vsel %vm608, %v775, 0
        %v798 = vsel %vm608, %v776, 0
        %v801 = vsel %vm608, %v777, 0
        %v804 = vsel %vm608, %v778, 0
        %806 = vmatpush.bf16.msra.mxu0 0
        %807 = vmatpush.bf16.msra.mxu0 0
        %808 = vmatpush.bf16.msra.mxu0 0
        %809 = vmatpush.bf16.msra.mxu0 %v641
        %810 = vmatpush.bf16.msra.mxu0 %v602
        %811 = vmatpush.bf16.msra.mxu0 %v601
        %812 = vmatpush.bf16.msra.mxu0 %v600
        %813 = vmatpush.bf16.msra.mxu0 %v599
        %814 = vmatmul.bf16.gmra.mxu0 %v780
        %v815 = vpop.f32.mrf.mxu0
        %v816 = vadd.f32 %v532, %v815
        %v817 = vpop.f32.mrf.mxu0
        %v818 = vadd.f32 %v532, %v817
        %819 = vmatmul.bf16.gmra.mxu0 %v783
        %v820 = vpop.f32.mrf.mxu0
        %v821 = vadd.f32 %v532, %v820
        %v822 = vpop.f32.mrf.mxu0
        %v823 = vadd.f32 %v532, %v822
        %824 = vmatmul.bf16.gmra.mxu0 %v786
        %v825 = vpop.f32.mrf.mxu0
        %v826 = vadd.f32 %v532, %v825
        %v827 = vpop.f32.mrf.mxu0
        %v828 = vadd.f32 %v532, %v827
        %829 = vmatmul.bf16.gmra.mxu0 %v789
        %v830 = vpop.f32.mrf.mxu0
        %v831 = vadd.f32 %v532, %v830
        %v832 = vpop.f32.mrf.mxu0
        %v833 = vadd.f32 %v532, %v832
        %834 = vmatmul.bf16.gmra.mxu0 %v792
        %v835 = vpop.f32.mrf.mxu0
        %v836 = vadd.f32 %v532, %v835
        %v837 = vpop.f32.mrf.mxu0
        %v838 = vadd.f32 %v532, %v837
        %839 = vmatmul.bf16.gmra.mxu0 %v795
        %v840 = vpop.f32.mrf.mxu0
        %v841 = vadd.f32 %v532, %v840
        %v842 = vpop.f32.mrf.mxu0
        %v843 = vadd.f32 %v532, %v842
        %844 = vmatmul.bf16.gmra.mxu0 %v798
        %v845 = vpop.f32.mrf.mxu0
        %v846 = vadd.f32 %v532, %v845
        %v847 = vpop.f32.mrf.mxu0
        %v848 = vadd.f32 %v532, %v847
        %849 = vmatmul.bf16.gmra.mxu0 %v801
        %v850 = vpop.f32.mrf.mxu0
        %v851 = vadd.f32 %v532, %v850
        %v852 = vpop.f32.mrf.mxu0
        %v853 = vadd.f32 %v532, %v852
        %854 = vmatmul.bf16.gmra.mxu0 %v804
        %v855 = vpop.f32.mrf.mxu0
        %v856 = vadd.f32 %v532, %v855
        %v857 = vpop.f32.mrf.mxu0
        %v858 = vadd.f32 %v532, %v857
        %859 = vdwg.mxu0
        %v860 = vmax.f32 %v816, 0.0
        %v861 = vmax.f32 %v818, 0.0
        %v862 = vmax.f32 %v821, 0.0
        %v863 = vmax.f32 %v823, 0.0
        %v864 = vmax.f32 %v826, 0.0
        %v865 = vmax.f32 %v828, 0.0
        %v866 = vmax.f32 %v831, 0.0
        %v867 = vmax.f32 %v833, 0.0
        %v868 = vmax.f32 %v836, 0.0
        %v869 = vmax.f32 %v838, 0.0
        %v870 = vmax.f32 %v841, 0.0
        %v871 = vmax.f32 %v843, 0.0
        %v872 = vmax.f32 %v846, 0.0
        %v873 = vmax.f32 %v848, 0.0
        %v874 = vmax.f32 %v851, 0.0
        %v875 = vmax.f32 %v853, 0.0
        %v876 = vmax.f32 %v856, 0.0
        %v877 = vmax.f32 %v858, 0.0
        %v878 = vmax.f32 %v697, %v860
        %v879 = vmax.f32 %v698, %v861
        %v880 = vmax.f32 %v699, %v862
        %v881 = vmax.f32 %v700, %v863
        %v882 = vmax.f32 %v701, %v864
        %v883 = vmax.f32 %v702, %v865
        %v884 = vmax.f32 %v703, %v866
        %v885 = vmax.f32 %v704, %v867
        %v886 = vmax.f32 %v705, %v868
        %v887 = vmax.f32 %v706, %v869
        %v888 = vmax.f32 %v707, %v870
        %v889 = vmax.f32 %v708, %v871
        %v890 = vmax.f32 %v709, %v872
        %v891 = vmax.f32 %v710, %v873
        %v892 = vmax.f32 %v711, %v874
        %v893 = vmax.f32 %v712, %v875
        %v894 = vmax.f32 %v713, %v876
        %v895 = vmax.f32 %v714, %v877
        %s896 = scalar_lea.vmem %s473, 144 [#allocation2]
        %v897 = vld [vmem:[%s896] sm:$0xf]
        %v898 = vld [vmem:[%s896 + $0x4] sm:$0xf]
        %v899 = vld [vmem:[%s896 + $0x8] sm:$0xf]
        %v900 = vld [vmem:[%s896 + $0xc] sm:$0xf]
        %v901 = vld [vmem:[%s896 + $0x10] sm:$0xf]
        %v902 = vld [vmem:[%s896 + $0x14] sm:$0xf]
        %v903 = vld [vmem:[%s896 + $0x18] sm:$0xf]
        %v904 = vld [vmem:[%s896 + $0x1c] sm:$0xf]
        %v905 = vld [vmem:[%s896 + $0x20] sm:$0xf]
        %v906 = vld [vmem:[%s896 + $0x24] sm:$0xf]
        %v907 = vld [vmem:[%s896 + $0x28] sm:$0xf]
        %v908 = vld [vmem:[%s896 + $0x2c] sm:$0xf]
        %v909 = vld [vmem:[%s896 + $0x30] sm:$0xf]
        %v910 = vld [vmem:[%s896 + $0x34] sm:$0xf]
        %v911 = vld [vmem:[%s896 + $0x38] sm:$0xf]
        %v912 = vld [vmem:[%s896 + $0x3c] sm:$0xf]
        %v913 = vld [vmem:[%s896 + $0x40] sm:$0xf]
        %v914 = vld [vmem:[%s896 + $0x44] sm:$0xf]
        %v933 = vunpack.c.l.b16 %v897
        %v934 = vunpack.c.l.b16 %v898
        %v935 = vunpack.c.l.b16 %v899
        %v936 = vunpack.c.l.b16 %v900
        %v937 = vunpack.c.l.b16 %v901
        %v938 = vunpack.c.l.b16 %v902
        %v939 = vunpack.c.l.b16 %v903
        %v940 = vunpack.c.l.b16 %v904
        %v941 = vunpack.c.l.b16 %v905
        %v942 = vunpack.c.l.b16 %v906
        %v943 = vunpack.c.l.b16 %v907
        %v944 = vunpack.c.l.b16 %v908
        %v945 = vunpack.c.l.b16 %v909
        %v946 = vunpack.c.l.b16 %v910
        %v947 = vunpack.c.l.b16 %v911
        %v948 = vunpack.c.l.b16 %v912
        %v949 = vunpack.c.l.b16 %v913
        %v950 = vunpack.c.l.b16 %v914
        %v951 = vpack.c.b16 %v934, %v933
        %v952 = vpack.c.b16 %v936, %v935
        %v953 = vpack.c.b16 %v938, %v937
        %v954 = vpack.c.b16 %v940, %v939
        %v955 = vpack.c.b16 %v942, %v941
        %v956 = vpack.c.b16 %v944, %v943
        %v957 = vpack.c.b16 %v946, %v945
        %v958 = vpack.c.b16 %v948, %v947
        %v959 = vpack.c.b16 %v950, %v949
        %v961 = vsel %vm608, %v951, 0
        %v964 = vsel %vm608, %v952, 0
        %v967 = vsel %vm608, %v953, 0
        %v970 = vsel %vm608, %v954, 0
        %v973 = vsel %vm608, %v955, 0
        %v976 = vsel %vm608, %v956, 0
        %v979 = vsel %vm608, %v957, 0
        %v982 = vsel %vm608, %v958, 0
        %v985 = vsel %vm608, %v959, 0
        %987 = vmatpush.bf16.msra.mxu0 0
        %988 = vmatpush.bf16.msra.mxu0 0
        %989 = vmatpush.bf16.msra.mxu0 0
        %990 = vmatpush.bf16.msra.mxu0 %v641
        %991 = vmatpush.bf16.msra.mxu0 %v602
        %992 = vmatpush.bf16.msra.mxu0 %v601
        %993 = vmatpush.bf16.msra.mxu0 %v600
        %994 = vmatpush.bf16.msra.mxu0 %v599
        %995 = vmatmul.bf16.gmra.mxu0 %v961
        %v996 = vpop.f32.mrf.mxu0
        %v997 = vadd.f32 %v532, %v996
        %v998 = vpop.f32.mrf.mxu0
        %v999 = vadd.f32 %v532, %v998
        %1000 = vmatmul.bf16.gmra.mxu0 %v964
        %v1001 = vpop.f32.mrf.mxu0
        %v1002 = vadd.f32 %v532, %v1001
        %v1003 = vpop.f32.mrf.mxu0
        %v1004 = vadd.f32 %v532, %v1003
        %1005 = vmatmul.bf16.gmra.mxu0 %v967
        %v1006 = vpop.f32.mrf.mxu0
        %v1007 = vadd.f32 %v532, %v1006
        %v1008 = vpop.f32.mrf.mxu0
        %v1009 = vadd.f32 %v532, %v1008
        %1010 = vmatmul.bf16.gmra.mxu0 %v970
        %v1011 = vpop.f32.mrf.mxu0
        %v1012 = vadd.f32 %v532, %v1011
        %v1013 = vpop.f32.mrf.mxu0
        %v1014 = vadd.f32 %v532, %v1013
        %1015 = vmatmul.bf16.gmra.mxu0 %v973
        %v1016 = vpop.f32.mrf.mxu0
        %v1017 = vadd.f32 %v532, %v1016
        %v1018 = vpop.f32.mrf.mxu0
        %v1019 = vadd.f32 %v532, %v1018
        %1020 = vmatmul.bf16.gmra.mxu0 %v976
        %v1021 = vpop.f32.mrf.mxu0
        %v1022 = vadd.f32 %v532, %v1021
        %v1023 = vpop.f32.mrf.mxu0
        %v1024 = vadd.f32 %v532, %v1023
        %1025 = vmatmul.bf16.gmra.mxu0 %v979
        %v1026 = vpop.f32.mrf.mxu0
        %v1027 = vadd.f32 %v532, %v1026
        %v1028 = vpop.f32.mrf.mxu0
        %v1029 = vadd.f32 %v532, %v1028
        %1030 = vmatmul.bf16.gmra.mxu0 %v982
        %v1031 = vpop.f32.mrf.mxu0
        %v1032 = vadd.f32 %v532, %v1031
        %v1033 = vpop.f32.mrf.mxu0
        %v1034 = vadd.f32 %v532, %v1033
        %1035 = vmatmul.bf16.gmra.mxu0 %v985
        %v1036 = vpop.f32.mrf.mxu0
        %v1037 = vadd.f32 %v532, %v1036
        %v1038 = vpop.f32.mrf.mxu0
        %v1039 = vadd.f32 %v532, %v1038
        %1040 = vdwg.mxu0
        %v1041 = vmax.f32 %v997, 0.0
        %v1042 = vmax.f32 %v999, 0.0
        %v1043 = vmax.f32 %v1002, 0.0
        %v1044 = vmax.f32 %v1004, 0.0
        %v1045 = vmax.f32 %v1007, 0.0
        %v1046 = vmax.f32 %v1009, 0.0
        %v1047 = vmax.f32 %v1012, 0.0
        %v1048 = vmax.f32 %v1014, 0.0
        %v1049 = vmax.f32 %v1017, 0.0
        %v1050 = vmax.f32 %v1019, 0.0
        %v1051 = vmax.f32 %v1022, 0.0
        %v1052 = vmax.f32 %v1024, 0.0
        %v1053 = vmax.f32 %v1027, 0.0
        %v1054 = vmax.f32 %v1029, 0.0
        %v1055 = vmax.f32 %v1032, 0.0
        %v1056 = vmax.f32 %v1034, 0.0
        %v1057 = vmax.f32 %v1037, 0.0
        %v1058 = vmax.f32 %v1039, 0.0
        %s1059 = scalar_lea.vmem %s473, 216 [#allocation2]
        %v1060 = vld [vmem:[%s1059] sm:$0xf]
        %v1061 = vld [vmem:[%s1059 + $0x4] sm:$0xf]
        %v1062 = vld [vmem:[%s1059 + $0x8] sm:$0xf]
        %v1063 = vld [vmem:[%s1059 + $0xc] sm:$0xf]
        %v1064 = vld [vmem:[%s1059 + $0x10] sm:$0xf]
        %v1065 = vld [vmem:[%s1059 + $0x14] sm:$0xf]
        %v1066 = vld [vmem:[%s1059 + $0x18] sm:$0xf]
        %v1067 = vld [vmem:[%s1059 + $0x1c] sm:$0xf]
        %v1068 = vld [vmem:[%s1059 + $0x20] sm:$0xf]
        %v1069 = vld [vmem:[%s1059 + $0x24] sm:$0xf]
        %v1070 = vld [vmem:[%s1059 + $0x28] sm:$0xf]
        %v1071 = vld [vmem:[%s1059 + $0x2c] sm:$0xf]
        %v1072 = vld [vmem:[%s1059 + $0x30] sm:$0xf]
        %v1073 = vld [vmem:[%s1059 + $0x34] sm:$0xf]
        %v1074 = vld [vmem:[%s1059 + $0x38] sm:$0xf]
        %v1075 = vld [vmem:[%s1059 + $0x3c] sm:$0xf]
        %v1076 = vld [vmem:[%s1059 + $0x40] sm:$0xf]
        %v1077 = vld [vmem:[%s1059 + $0x44] sm:$0xf]
        %v1096 = vunpack.c.l.b16 %v1060
        %v1097 = vunpack.c.l.b16 %v1061
        %v1098 = vunpack.c.l.b16 %v1062
        %v1099 = vunpack.c.l.b16 %v1063
        %v1100 = vunpack.c.l.b16 %v1064
        %v1101 = vunpack.c.l.b16 %v1065
        %v1102 = vunpack.c.l.b16 %v1066
        %v1103 = vunpack.c.l.b16 %v1067
        %v1104 = vunpack.c.l.b16 %v1068
        %v1105 = vunpack.c.l.b16 %v1069
        %v1106 = vunpack.c.l.b16 %v1070
        %v1107 = vunpack.c.l.b16 %v1071
        %v1108 = vunpack.c.l.b16 %v1072
        %v1109 = vunpack.c.l.b16 %v1073
        %v1110 = vunpack.c.l.b16 %v1074
        %v1111 = vunpack.c.l.b16 %v1075
        %v1112 = vunpack.c.l.b16 %v1076
        %v1113 = vunpack.c.l.b16 %v1077
        %v1114 = vpack.c.b16 %v1097, %v1096
        %v1115 = vpack.c.b16 %v1099, %v1098
        %v1116 = vpack.c.b16 %v1101, %v1100
        %v1117 = vpack.c.b16 %v1103, %v1102
        %v1118 = vpack.c.b16 %v1105, %v1104
        %v1119 = vpack.c.b16 %v1107, %v1106
        %v1120 = vpack.c.b16 %v1109, %v1108
        %v1121 = vpack.c.b16 %v1111, %v1110
        %v1122 = vpack.c.b16 %v1113, %v1112
        %v1124 = vsel %vm608, %v1114, 0
        %v1127 = vsel %vm608, %v1115, 0
        %v1130 = vsel %vm608, %v1116, 0
        %v1133 = vsel %vm608, %v1117, 0
        %v1136 = vsel %vm608, %v1118, 0
        %v1139 = vsel %vm608, %v1119, 0
        %v1142 = vsel %vm608, %v1120, 0
        %v1145 = vsel %vm608, %v1121, 0
        %v1148 = vsel %vm608, %v1122, 0
        %1150 = vmatpush.bf16.msra.mxu0 0
        %1151 = vmatpush.bf16.msra.mxu0 0
        %1152 = vmatpush.bf16.msra.mxu0 0
        %1153 = vmatpush.bf16.msra.mxu0 %v641
        %1154 = vmatpush.bf16.msra.mxu0 %v602
        %1155 = vmatpush.bf16.msra.mxu0 %v601
        %1156 = vmatpush.bf16.msra.mxu0 %v600
        %1157 = vmatpush.bf16.msra.mxu0 %v599
        %1158 = vmatmul.bf16.gmra.mxu0 %v1124
        %v1159 = vpop.f32.mrf.mxu0
        %v1160 = vadd.f32 %v532, %v1159
        %v1161 = vpop.f32.mrf.mxu0
        %v1162 = vadd.f32 %v532, %v1161
        %1163 = vmatmul.bf16.gmra.mxu0 %v1127
        %v1164 = vpop.f32.mrf.mxu0
        %v1165 = vadd.f32 %v532, %v1164
        %v1166 = vpop.f32.mrf.mxu0
        %v1167 = vadd.f32 %v532, %v1166
        %1168 = vmatmul.bf16.gmra.mxu0 %v1130
        %v1169 = vpop.f32.mrf.mxu0
        %v1170 = vadd.f32 %v532, %v1169
        %v1171 = vpop.f32.mrf.mxu0
        %v1172 = vadd.f32 %v532, %v1171
        %1173 = vmatmul.bf16.gmra.mxu0 %v1133
        %v1174 = vpop.f32.mrf.mxu0
        %v1175 = vadd.f32 %v532, %v1174
        %v1176 = vpop.f32.mrf.mxu0
        %v1177 = vadd.f32 %v532, %v1176
        %1178 = vmatmul.bf16.gmra.mxu0 %v1136
        %v1179 = vpop.f32.mrf.mxu0
        %v1180 = vadd.f32 %v532, %v1179
        %v1181 = vpop.f32.mrf.mxu0
        %v1182 = vadd.f32 %v532, %v1181
        %1183 = vmatmul.bf16.gmra.mxu0 %v1139
        %v1184 = vpop.f32.mrf.mxu0
        %v1185 = vadd.f32 %v532, %v1184
        %v1186 = vpop.f32.mrf.mxu0
        %v1187 = vadd.f32 %v532, %v1186
        %1188 = vmatmul.bf16.gmra.mxu0 %v1142
        %v1189 = vpop.f32.mrf.mxu0
        %v1190 = vadd.f32 %v532, %v1189
        %v1191 = vpop.f32.mrf.mxu0
        %v1192 = vadd.f32 %v532, %v1191
        %1193 = vmatmul.bf16.gmra.mxu0 %v1145
        %v1194 = vpop.f32.mrf.mxu0
        %v1195 = vadd.f32 %v532, %v1194
        %v1196 = vpop.f32.mrf.mxu0
        %v1197 = vadd.f32 %v532, %v1196
        %1198 = vmatmul.bf16.gmra.mxu0 %v1148
        %v1199 = vpop.f32.mrf.mxu0
        %v1200 = vadd.f32 %v532, %v1199
        %v1201 = vpop.f32.mrf.mxu0
        %v1202 = vadd.f32 %v532, %v1201
        %1203 = vdwg.mxu0
        %v1204 = vmax.f32 %v1160, 0.0
        %v1205 = vmax.f32 %v1162, 0.0
        %v1206 = vmax.f32 %v1165, 0.0
        %v1207 = vmax.f32 %v1167, 0.0
        %v1208 = vmax.f32 %v1170, 0.0
        %v1209 = vmax.f32 %v1172, 0.0
        %v1210 = vmax.f32 %v1175, 0.0
        %v1211 = vmax.f32 %v1177, 0.0
        %v1212 = vmax.f32 %v1180, 0.0
        %v1213 = vmax.f32 %v1182, 0.0
        %v1214 = vmax.f32 %v1185, 0.0
        %v1215 = vmax.f32 %v1187, 0.0
        %v1216 = vmax.f32 %v1190, 0.0
        %v1217 = vmax.f32 %v1192, 0.0
        %v1218 = vmax.f32 %v1195, 0.0
        %v1219 = vmax.f32 %v1197, 0.0
        %v1220 = vmax.f32 %v1200, 0.0
        %v1221 = vmax.f32 %v1202, 0.0
        %v1222 = vmax.f32 %v1041, %v1204
        %v1223 = vmax.f32 %v1042, %v1205
        %v1224 = vmax.f32 %v1043, %v1206
        %v1225 = vmax.f32 %v1044, %v1207
        %v1226 = vmax.f32 %v1045, %v1208
        %v1227 = vmax.f32 %v1046, %v1209
        %v1228 = vmax.f32 %v1047, %v1210
        %v1229 = vmax.f32 %v1048, %v1211
        %v1230 = vmax.f32 %v1049, %v1212
        %v1231 = vmax.f32 %v1050, %v1213
        %v1232 = vmax.f32 %v1051, %v1214
        %v1233 = vmax.f32 %v1052, %v1215
        %v1234 = vmax.f32 %v1053, %v1216
        %v1235 = vmax.f32 %v1054, %v1217
        %v1236 = vmax.f32 %v1055, %v1218
        %v1237 = vmax.f32 %v1056, %v1219
        %v1238 = vmax.f32 %v1057, %v1220
        %v1239 = vmax.f32 %v1058, %v1221
        %v1240 = vmax.f32 %v878, %v1222
        %v1241 = vmax.f32 %v879, %v1223
        %v1242 = vmax.f32 %v880, %v1224
        %v1243 = vmax.f32 %v881, %v1225
        %v1244 = vmax.f32 %v882, %v1226
        %v1245 = vmax.f32 %v883, %v1227
        %v1246 = vmax.f32 %v884, %v1228
        %v1247 = vmax.f32 %v885, %v1229
        %v1248 = vmax.f32 %v886, %v1230
        %v1249 = vmax.f32 %v887, %v1231
        %v1250 = vmax.f32 %v888, %v1232
        %v1251 = vmax.f32 %v889, %v1233
        %v1252 = vmax.f32 %v890, %v1234
        %v1253 = vmax.f32 %v891, %v1235
        %v1254 = vmax.f32 %v892, %v1236
        %v1255 = vmax.f32 %v893, %v1237
        %v1256 = vmax.f32 %v894, %v1238
        %v1257 = vmax.f32 %v895, %v1239
        %v1258 = vpack.c.bf16 %v1240, %v1240
        %v1259 = vpack.c.bf16 %v1241, %v1241
        %v1260 = vpack.c.bf16 %v1242, %v1242
        %v1261 = vpack.c.bf16 %v1243, %v1243
        %v1262 = vpack.c.bf16 %v1244, %v1244
        %v1263 = vpack.c.bf16 %v1245, %v1245
        %v1264 = vpack.c.bf16 %v1246, %v1246
        %v1265 = vpack.c.bf16 %v1247, %v1247
        %v1266 = vpack.c.bf16 %v1248, %v1248
        %v1267 = vpack.c.bf16 %v1249, %v1249
        %v1268 = vpack.c.bf16 %v1250, %v1250
        %v1269 = vpack.c.bf16 %v1251, %v1251
        %v1270 = vpack.c.bf16 %v1252, %v1252
        %v1271 = vpack.c.bf16 %v1253, %v1253
        %v1272 = vpack.c.bf16 %v1254, %v1254
        %v1273 = vpack.c.bf16 %v1255, %v1255
        %v1274 = vpack.c.bf16 %v1256, %v1256
        %v1275 = vpack.c.bf16 %v1257, %v1257
        %vm1276 = vcmask 44032
        %1277 = vst.msk [vmem:[%s499] sm:$0xf] %vm1276, %v1258
        %1278 = vst.msk [vmem:[%s499 + $0x4] sm:$0xf] %vm1276, %v1259
        %1279 = vst.msk [vmem:[%s499 + $0x8] sm:$0xf] %vm1276, %v1260
        %1280 = vst.msk [vmem:[%s499 + $0xc] sm:$0xf] %vm1276, %v1261
        %1281 = vst.msk [vmem:[%s499 + $0x10] sm:$0xf] %vm1276, %v1262
        %1282 = vst.msk [vmem:[%s499 + $0x14] sm:$0xf] %vm1276, %v1263
        %1283 = vst.msk [vmem:[%s499 + $0x18] sm:$0xf] %vm1276, %v1264
        %1284 = vst.msk [vmem:[%s499 + $0x1c] sm:$0xf] %vm1276, %v1265
        %1285 = vst.msk [vmem:[%s499 + $0x20] sm:$0xf] %vm1276, %v1266
        %1286 = vst.msk [vmem:[%s499 + $0x24] sm:$0xf] %vm1276, %v1267
        %1287 = vst.msk [vmem:[%s499 + $0x28] sm:$0xf] %vm1276, %v1268
        %1288 = vst.msk [vmem:[%s499 + $0x2c] sm:$0xf] %vm1276, %v1269
        %1289 = vst.msk [vmem:[%s499 + $0x30] sm:$0xf] %vm1276, %v1270
        %1290 = vst.msk [vmem:[%s499 + $0x34] sm:$0xf] %vm1276, %v1271
        %1291 = vst.msk [vmem:[%s499 + $0x38] sm:$0xf] %vm1276, %v1272
        %1292 = vst.msk [vmem:[%s499 + $0x3c] sm:$0xf] %vm1276, %v1273
        %1293 = vst.msk [vmem:[%s499 + $0x40] sm:$0xf] %vm1276, %v1274
        %1294 = vst.msk [vmem:[%s499 + $0x44] sm:$0xf] %vm1276, %v1275
        %s1295 = smul.u32 18, %s14
        %p1296 = scmp.lt.s32.totalorder %s1295, 35
        %s1297 = scalar_select %p1296, %s1295, 35
        %s1298 = smul.addr %s1297, 4
        %s1299 = scalar_lea.vmem %s3, %s1298
        // Predicated region
        $region74: #{net_forward.2} parent=68 // pred_check
          %p1300 = pneg %p100
        $region75: #{net_forward.2} parent=68 // pred_check_branch
          %1302 = sbr.rel (%p1300) target = $region77
        $region76: #{net_forward.2} parent=68 // pred_region
          %s1303 = smul.u32 18, %s14
        $region77: #{net_forward.2} parent=68 // pred_fallthru
          _
      $region69: #{net_forward.2} parent=5 // pred_fallthru
        _
      %p1304 = scmp.le.s32.totalorder 2, %s9
      // Predicated region
      $region78: #{net_forward.2} parent=5 // pred_check
        %p1305 = pneg %p1304
      $region79: #{net_forward.2} parent=5 // pred_check_branch
        %1307 = sbr.rel (%p1305) target = $region81
      $region80: #{net_forward.2} parent=5 // pred_region
        %s1308 = ssub.s32 %s9, 2
        // Predicated region
        $region82: #{net_forward.2} parent=80 // pred_check
          %p1309 = pneg %p106
        $region83: #{net_forward.2} parent=80 // pred_check_branch
          %1311 = sbr.rel (%p1309) target = $region85
        $region84: #{net_forward.2} parent=80 // pred_region
          %s1312 = smul.u32 18, %s15
          %p1313 = scmp.lt.s32.totalorder %s1312, 35
          %s1314 = scalar_select %p1313, %s1312, 35
          %s1315 = smul.addr %s1314, 4
          %s1316 = scalar_lea.vmem %s3, %s1315
        $region85: #{net_forward.2} parent=80 // pred_fallthru
          _
      $region81: #{net_forward.2} parent=5 // pred_fallthru
        _
    $region6: #{net_forward.2} parent=1 // loop_footer
      %s13 = sadd.s32 1, %s9
    $region7: #{net_forward.2} parent=1 // loop_footer_branch
      %8 = sbr.rel target = $region3
    $region8: #{net_forward.2} parent=1 // loop_exit
      _

// kernel: net_forward.3
$region0: #{net_forward.3}
  #allocation0 [shape = 'u32[]', space=smem, size = 0x4, offset = 0x4, fixed_abs, tag = 'smem constant byte address 0x4 - core index']
  #allocation1 [shape = 'u32[72,128]{1,0:T(1,128)}', space=vmem, size = 0x9000, scoped, tag = 'internal scratch']
  %s0 = inlined_call_operand.vmem [shape: bf16[4,32,150], index: 0, kind: input, shape index: {}]
  %s1 = inlined_call_operand.vmem [shape: bf16[150,128], index: 1, kind: input, shape index: {}]
  %s2 = inlined_call_operand.vmem [shape: f32[1,128], index: 2, kind: input, shape index: {}]
  %s3 = inlined_call_operand.vmem [shape: bf16[256,128], index: 3, kind: input, shape index: {}]
  %s4 = inlined_call_operand.vmem [shape: f32[1,128], index: 4, kind: input, shape index: {}]
  %s5 = inlined_call_operand.vmem [shape: bf16[128,128], index: 5, kind: input, shape index: {}]
  %s6 = inlined_call_operand.vmem [shape: f32[1,128], index: 6, kind: input, shape index: {}]
  %s7 = inlined_call_operand.vmem [shape: bf16[128,10], index: 7, kind: input, shape index: {}]
  %s8 = inlined_call_operand.vmem [shape: f32[1,10], index: 8, kind: input, shape index: {}]
  %s9 = inlined_call_operand.hbm [shape: f32[2,10], index: 9, kind: output, shape index: {}]
  %s10 = sld [smem:[#allocation0]]
  $region46: #{net_forward.3} parent=0
    _
  %s12 = ssub.s32 1, %s10
  %s13 = scalar_select 0, %s12, %s10
  $region1: #{net_forward.3} parent=0
    #allocation2 [shape = 'u8[1024]{0}', space=vmem, size = 0x400, scoped, tag = 'output window, operand 0, single buffered']
    #allocation3 [shape = 's32[1]{0}', space=sflag, size = 0x4, scoped, tag = 'scoped memory for net_forward.3']
    %14 = vsyncpa [#allocation3], 0
    // Predicated region
    $region2: #{net_forward.3} parent=1 // pred_check
      _
    $region3: #{net_forward.3} parent=1 // pred_check_branch
      %16 = sbr.rel (0) target = $region5
    $region4: #{net_forward.3} parent=1 // pred_region
      _
    $region5: #{net_forward.3} parent=1 // pred_fallthru
      _
    // Predicated region
    $region6: #{net_forward.3} parent=1 // pred_check
      _
    $region7: #{net_forward.3} parent=1 // pred_check_branch
      %18 = sbr.rel (0) target = $region9
    $region8: #{net_forward.3} parent=1 // pred_region
      _
    $region9: #{net_forward.3} parent=1 // pred_fallthru
      _
    // Predicated region
    $region10: #{net_forward.3} parent=1 // pred_check
      _
    $region11: #{net_forward.3} parent=1 // pred_check_branch
      %20 = sbr.rel (0) target = $region13
    $region12: #{net_forward.3} parent=1 // pred_region
      _
    $region13: #{net_forward.3} parent=1 // pred_fallthru
      _
    // Predicated region
    $region14: #{net_forward.3} parent=1 // pred_check
      _
    $region15: #{net_forward.3} parent=1 // pred_check_branch
      %22 = sbr.rel (0) target = $region17
    $region16: #{net_forward.3} parent=1 // pred_region
      _
    $region17: #{net_forward.3} parent=1 // pred_fallthru
      _
    // Predicated region
    $region18: #{net_forward.3} parent=1 // pred_check
      _
    $region19: #{net_forward.3} parent=1 // pred_check_branch
      %24 = sbr.rel (0) target = $region21
    $region20: #{net_forward.3} parent=1 // pred_region
      _
    $region21: #{net_forward.3} parent=1 // pred_fallthru
      _
    // Predicated region
    $region22: #{net_forward.3} parent=1 // pred_check
      _
    $region23: #{net_forward.3} parent=1 // pred_check_branch
      %26 = sbr.rel (0) target = $region25
    $region24: #{net_forward.3} parent=1 // pred_region
      _
    $region25: #{net_forward.3} parent=1 // pred_fallthru
      _
    // Predicated region
    $region26: #{net_forward.3} parent=1 // pred_check
      _
    $region27: #{net_forward.3} parent=1 // pred_check_branch
      %28 = sbr.rel (0) target = $region29
    $region28: #{net_forward.3} parent=1 // pred_region
      _
    $region29: #{net_forward.3} parent=1 // pred_fallthru
      _
    // Predicated region
    $region30: #{net_forward.3} parent=1 // pred_check
      _
    $region31: #{net_forward.3} parent=1 // pred_check_branch
      %30 = sbr.rel (0) target = $region33
    $region32: #{net_forward.3} parent=1 // pred_region
      _
    $region33: #{net_forward.3} parent=1 // pred_fallthru
      _
    // Predicated region
    $region34: #{net_forward.3} parent=1 // pred_check
      _
    $region35: #{net_forward.3} parent=1 // pred_check_branch
      %32 = sbr.rel (0) target = $region37
    $region36: #{net_forward.3} parent=1 // pred_region
      _
    $region37: #{net_forward.3} parent=1 // pred_fallthru
      _
    %v34 = vld [vmem:[%s1] sm:$0xf]
    %v35 = vld [vmem:[%s1 + $0x4] sm:$0xf]
    %v36 = vld [vmem:[%s1 + $0x8] sm:$0xf]
    %v37 = vld [vmem:[%s1 + $0xc] sm:$0xf]
    %v38 = vld [vmem:[%s1 + $0x10] sm:$0xf]
    %v39 = vld [vmem:[%s1 + $0x14] sm:$0xf]
    %v40 = vld [vmem:[%s1 + $0x18] sm:$0xf]
    %v41 = vld [vmem:[%s1 + $0x1c] sm:$0xf]
    %v42 = vld [vmem:[%s1 + $0x20] sm:$0xf]
    %v43 = vld [vmem:[%s1 + $0x24] sm:$0xf]
    %v44 = vld [vmem:[%s1 + $0x28] sm:$0xf]
    %v45 = vld [vmem:[%s1 + $0x2c] sm:$0xf]
    %v46 = vld [vmem:[%s1 + $0x30] sm:$0xf]
    %v47 = vld [vmem:[%s1 + $0x34] sm:$0xf]
    %v48 = vld [vmem:[%s1 + $0x38] sm:$0xf]
    %v49 = vld [vmem:[%s1 + $0x3c] sm:$0xf]
    %v50 = vld [vmem:[%s1 + $0x40] sm:$0xf]
    %v51 = vld [vmem:[%s1 + $0x44] sm:$0xf]
    %v52 = vld [vmem:[%s1 + $0x48] sm:$0x7]
    %v53 = vld [vmem:[%s2] sm:$0x1]
    %v54 = vld [vmem:[%s0] sm:$0xff]
    %v55 = vld [vmem:[%s0 + $0x8] sm:$0xff]
    %v56 = vld [vmem:[%s0 + $0x10] sm:$0xff]
    %v57 = vld [vmem:[%s0 + $0x18] sm:$0xff]
    %v59 = vperm.slane %v53, 0
    %v65 = vunpack.c.l.b16 %v54
    %v66 = vunpack.c.h.b16 %v54
    %v67 = vunpack.c.l.b16 %v55
    %v68 = vunpack.c.h.b16 %v55
    %v69 = vunpack.c.l.b16 %v56
    %v70 = vunpack.c.h.b16 %v56
    %v71 = vunpack.c.l.b16 %v57
    %v72 = vunpack.c.h.b16 %v57
    %v73 = vpack.c.b16 %v67, %v65
    %v74 = vpack.c.b16 %v68, %v66
    %v75 = vpack.c.b16 %v71, %v69
    %v76 = vpack.c.b16 %v72, %v70
    %v98 = vunpack.c.l.b16 %v34
    %v99 = vunpack.c.l.b16 %v35
    %v100 = vunpack.c.l.b16 %v36
    %v101 = vunpack.c.l.b16 %v37
    %v102 = vunpack.c.l.b16 %v38
    %v103 = vunpack.c.l.b16 %v39
    %v104 = vunpack.c.l.b16 %v40
    %v105 = vunpack.c.l.b16 %v41
    %v106 = vunpack.c.l.b16 %v42
    %v107 = vunpack.c.l.b16 %v43
    %v108 = vunpack.c.l.b16 %v44
    %v109 = vunpack.c.l.b16 %v45
    %v110 = vunpack.c.l.b16 %v46
    %v111 = vunpack.c.l.b16 %v47
    %v112 = vunpack.c.l.b16 %v48
    %v113 = vunpack.c.l.b16 %v49
    %v114 = vunpack.c.l.b16 %v50
    %v115 = vunpack.c.l.b16 %v51
    %v116 = vunpack.c.l.b16 %v52
    %v117 = vpack.c.b16 %v99, %v98
    %v118 = vpack.c.b16 %v101, %v100
    %v119 = vpack.c.b16 %v103, %v102
    %v120 = vpack.c.b16 %v105, %v104
    %v121 = vpack.c.b16 %v107, %v106
    %v122 = vpack.c.b16 %v109, %v108
    %v123 = vpack.c.b16 %v111, %v110
    %v124 = vpack.c.b16 %v113, %v112
    %v125 = vpack.c.b16 %v115, %v114
    %v126 = vpack.c.b16 %v116, %v116
    %vm136 = vcmask 179200
    %v138 = vsel %vm136, %v74, 0
    %v141 = vsel %vm136, %v76, 0
    %vm143 = vcmask 1042432
    %v145 = vsel %vm143, %v126, 0
    %147 = vmatpush.bf16.msra.mxu0 %v124
    %148 = vmatpush.bf16.msra.mxu0 %v123
    %149 = vmatpush.bf16.msra.mxu0 %v122
    %150 = vmatpush.bf16.msra.mxu0 %v121
    %151 = vmatpush.bf16.msra.mxu0 %v120
    %152 = vmatpush.bf16.msra.mxu0 %v119
    %153 = vmatpush.bf16.msra.mxu0 %v118
    %154 = vmatpush.bf16.msra.mxu0 %v117
    %155 = vmatmul.bf16.gmra.mxu0 %v73
    %v156 = vpop.f32.mrf.mxu0
    %v157 = vadd.f32 %v59, %v156
    %v158 = vpop.f32.mrf.mxu0
    %v159 = vadd.f32 %v59, %v158
    %160 = vmatmul.bf16.gmra.mxu0 %v75
    %v161 = vpop.f32.mrf.mxu0
    %v162 = vadd.f32 %v59, %v161
    %v163 = vpop.f32.mrf.mxu0
    %v164 = vadd.f32 %v59, %v163
    %165 = vdwg.mxu0
    %166 = vmatpush.bf16.msra.mxu0 0
    %167 = vmatpush.bf16.msra.mxu0 0
    %168 = vmatpush.bf16.msra.mxu0 0
    %169 = vmatpush.bf16.msra.mxu0 0
    %170 = vmatpush.bf16.msra.mxu0 0
    %171 = vmatpush.bf16.msra.mxu0 0
    %172 = vmatpush.bf16.msra.mxu0 %v145
    %173 = vmatpush.bf16.msra.mxu0 %v125
    %174 = vmatmul.bf16.gmra.mxu0 %v138
    %v175 = vpop.f32.mrf.mxu0
    %v176 = vadd.f32 %v157, %v175
    %v177 = vpop.f32.mrf.mxu0
    %v178 = vadd.f32 %v159, %v177
    %179 = vmatmul.bf16.gmra.mxu0 %v141
    %v180 = vpop.f32.mrf.mxu0
    %v181 = vadd.f32 %v162, %v180
    %v182 = vpop.f32.mrf.mxu0
    %v183 = vadd.f32 %v164, %v182
    %184 = vdwg.mxu0
    %v185 = vmax.f32 %v176, 0.0
    %v186 = vmax.f32 %v178, 0.0
    %v187 = vmax.f32 %v181, 0.0
    %v188 = vmax.f32 %v183, 0.0
    %s189 = scalar_lea.vmem %s0, 32
    %v190 = vld [vmem:[%s189] sm:$0xff]
    %v191 = vld [vmem:[%s189 + $0x8] sm:$0xff]
    %v192 = vld [vmem:[%s189 + $0x10] sm:$0xff]
    %v193 = vld [vmem:[%s189 + $0x18] sm:$0xff]
    %v198 = vunpack.c.l.b16 %v190
    %v199 = vunpack.c.h.b16 %v190
    %v200 = vunpack.c.l.b16 %v191
    %v201 = vunpack.c.h.b16 %v191
    %v202 = vunpack.c.l.b16 %v192
    %v203 = vunpack.c.h.b16 %v192
    %v204 = vunpack.c.l.b16 %v193
    %v205 = vunpack.c.h.b16 %v193
    %v206 = vpack.c.b16 %v200, %v198
    %v207 = vpack.c.b16 %v201, %v199
    %v208 = vpack.c.b16 %v204, %v202
    %v209 = vpack.c.b16 %v205, %v203
    %v213 = vsel %vm136, %v207, 0
    %v216 = vsel %vm136, %v209, 0
    %218 = vmatpush.bf16.msra.mxu0 %v124
    %219 = vmatpush.bf16.msra.mxu0 %v123
    %220 = vmatpush.bf16.msra.mxu0 %v122
    %221 = vmatpush.bf16.msra.mxu0 %v121
    %222 = vmatpush.bf16.msra.mxu0 %v120
    %223 = vmatpush.bf16.msra.mxu0 %v119
    %224 = vmatpush.bf16.msra.mxu0 %v118
    %225 = vmatpush.bf16.msra.mxu0 %v117
    %226 = vmatmul.bf16.gmra.mxu0 %v206
    %v227 = vpop.f32.mrf.mxu0
    %v228 = vadd.f32 %v59, %v227
    %v229 = vpop.f32.mrf.mxu0
    %v230 = vadd.f32 %v59, %v229
    %231 = vmatmul.bf16.gmra.mxu0 %v208
    %v232 = vpop.f32.mrf.mxu0
    %v233 = vadd.f32 %v59, %v232
    %v234 = vpop.f32.mrf.mxu0
    %v235 = vadd.f32 %v59, %v234
    %236 = vdwg.mxu0
    %237 = vmatpush.bf16.msra.mxu0 0
    %238 = vmatpush.bf16.msra.mxu0 0
    %239 = vmatpush.bf16.msra.mxu0 0
    %240 = vmatpush.bf16.msra.mxu0 0
    %241 = vmatpush.bf16.msra.mxu0 0
    %242 = vmatpush.bf16.msra.mxu0 0
    %243 = vmatpush.bf16.msra.mxu0 %v145
    %244 = vmatpush.bf16.msra.mxu0 %v125
    %245 = vmatmul.bf16.gmra.mxu0 %v213
    %v246 = vpop.f32.mrf.mxu0
    %v247 = vadd.f32 %v228, %v246
    %v248 = vpop.f32.mrf.mxu0
    %v249 = vadd.f32 %v230, %v248
    %250 = vmatmul.bf16.gmra.mxu0 %v216
    %v251 = vpop.f32.mrf.mxu0
    %v252 = vadd.f32 %v233, %v251
    %v253 = vpop.f32.mrf.mxu0
    %v254 = vadd.f32 %v235, %v253
    %255 = vdwg.mxu0
    %v256 = vmax.f32 %v247, 0.0
    %v257 = vmax.f32 %v249, 0.0
    %v258 = vmax.f32 %v252, 0.0
    %v259 = vmax.f32 %v254, 0.0
    %v260 = vmax.f32 %v185, %v256
    %v261 = vmax.f32 %v186, %v257
    %v262 = vmax.f32 %v187, %v258
    %v263 = vmax.f32 %v188, %v259
    %s264 = scalar_lea.vmem %s0, 64
    %v265 = vld [vmem:[%s264] sm:$0xff]
    %v266 = vld [vmem:[%s264 + $0x8] sm:$0xff]
    %v267 = vld [vmem:[%s264 + $0x10] sm:$0xff]
    %v268 = vld [vmem:[%s264 + $0x18] sm:$0xff]
    %v273 = vunpack.c.l.b16 %v265
    %v274 = vunpack.c.h.b16 %v265
    %v275 = vunpack.c.l.b16 %v266
    %v276 = vunpack.c.h.b16 %v266
    %v277 = vunpack.c.l.b16 %v267
    %v278 = vunpack.c.h.b16 %v267
    %v279 = vunpack.c.l.b16 %v268
    %v280 = vunpack.c.h.b16 %v268
    %v281 = vpack.c.b16 %v275, %v273
    %v282 = vpack.c.b16 %v276, %v274
    %v283 = vpack.c.b16 %v279, %v277
    %v284 = vpack.c.b16 %v280, %v278
    %v288 = vsel %vm136, %v282, 0
    %v291 = vsel %vm136, %v284, 0
    %293 = vmatpush.bf16.msra.mxu0 %v124
    %294 = vmatpush.bf16.msra.mxu0 %v123
    %295 = vmatpush.bf16.msra.mxu0 %v122
    %296 = vmatpush.bf16.msra.mxu0 %v121
    %297 = vmatpush.bf16.msra.mxu0 %v120
    %298 = vmatpush.bf16.msra.mxu0 %v119
    %299 = vmatpush.bf16.msra.mxu0 %v118
    %300 = vmatpush.bf16.msra.mxu0 %v117
    %301 = vmatmul.bf16.gmra.mxu0 %v281
    %v302 = vpop.f32.mrf.mxu0
    %v303 = vadd.f32 %v59, %v302
    %v304 = vpop.f32.mrf.mxu0
    %v305 = vadd.f32 %v59, %v304
    %306 = vmatmul.bf16.gmra.mxu0 %v283
    %v307 = vpop.f32.mrf.mxu0
    %v308 = vadd.f32 %v59, %v307
    %v309 = vpop.f32.mrf.mxu0
    %v310 = vadd.f32 %v59, %v309
    %311 = vdwg.mxu0
    %312 = vmatpush.bf16.msra.mxu0 0
    %313 = vmatpush.bf16.msra.mxu0 0
    %314 = vmatpush.bf16.msra.mxu0 0
    %315 = vmatpush.bf16.msra.mxu0 0
    %316 = vmatpush.bf16.msra.mxu0 0
    %317 = vmatpush.bf16.msra.mxu0 0
    %318 = vmatpush.bf16.msra.mxu0 %v145
    %319 = vmatpush.bf16.msra.mxu0 %v125
    %320 = vmatmul.bf16.gmra.mxu0 %v288
    %v321 = vpop.f32.mrf.mxu0
    %v322 = vadd.f32 %v303, %v321
    %v323 = vpop.f32.mrf.mxu0
    %v324 = vadd.f32 %v305, %v323
    %325 = vmatmul.bf16.gmra.mxu0 %v291
    %v326 = vpop.f32.mrf.mxu0
    %v327 = vadd.f32 %v308, %v326
    %v328 = vpop.f32.mrf.mxu0
    %v329 = vadd.f32 %v310, %v328
    %330 = vdwg.mxu0
    %v331 = vmax.f32 %v322, 0.0
    %v332 = vmax.f32 %v324, 0.0
    %v333 = vmax.f32 %v327, 0.0
    %v334 = vmax.f32 %v329, 0.0
    %s335 = scalar_lea.vmem %s0, 96
    %v336 = vld [vmem:[%s335] sm:$0xff]
    %v337 = vld [vmem:[%s335 + $0x8] sm:$0xff]
    %v338 = vld [vmem:[%s335 + $0x10] sm:$0xff]
    %v339 = vld [vmem:[%s335 + $0x18] sm:$0xff]
    %v344 = vunpack.c.l.b16 %v336
    %v345 = vunpack.c.h.b16 %v336
    %v346 = vunpack.c.l.b16 %v337
    %v347 = vunpack.c.h.b16 %v337
    %v348 = vunpack.c.l.b16 %v338
    %v349 = vunpack.c.h.b16 %v338
    %v350 = vunpack.c.l.b16 %v339
    %v351 = vunpack.c.h.b16 %v339
    %v352 = vpack.c.b16 %v346, %v344
    %v353 = vpack.c.b16 %v347, %v345
    %v354 = vpack.c.b16 %v350, %v348
    %v355 = vpack.c.b16 %v351, %v349
    %v359 = vsel %vm136, %v353, 0
    %v362 = vsel %vm136, %v355, 0
    %364 = vmatpush.bf16.msra.mxu0 %v124
    %365 = vmatpush.bf16.msra.mxu0 %v123
    %366 = vmatpush.bf16.msra.mxu0 %v122
    %367 = vmatpush.bf16.msra.mxu0 %v121
    %368 = vmatpush.bf16.msra.mxu0 %v120
    %369 = vmatpush.bf16.msra.mxu0 %v119
    %370 = vmatpush.bf16.msra.mxu0 %v118
    %371 = vmatpush.bf16.msra.mxu0 %v117
    %372 = vmatmul.bf16.gmra.mxu0 %v352
    %v373 = vpop.f32.mrf.mxu0
    %v374 = vadd.f32 %v59, %v373
    %v375 = vpop.f32.mrf.mxu0
    %v376 = vadd.f32 %v59, %v375
    %377 = vmatmul.bf16.gmra.mxu0 %v354
    %v378 = vpop.f32.mrf.mxu0
    %v379 = vadd.f32 %v59, %v378
    %v380 = vpop.f32.mrf.mxu0
    %v381 = vadd.f32 %v59, %v380
    %382 = vdwg.mxu0
    %383 = vmatpush.bf16.msra.mxu0 0
    %384 = vmatpush.bf16.msra.mxu0 0
    %385 = vmatpush.bf16.msra.mxu0 0
    %386 = vmatpush.bf16.msra.mxu0 0
    %387 = vmatpush.bf16.msra.mxu0 0
    %388 = vmatpush.bf16.msra.mxu0 0
    %389 = vmatpush.bf16.msra.mxu0 %v145
    %390 = vmatpush.bf16.msra.mxu0 %v125
    %391 = vmatmul.bf16.gmra.mxu0 %v359
    %v392 = vpop.f32.mrf.mxu0
    %v393 = vadd.f32 %v374, %v392
    %v394 = vpop.f32.mrf.mxu0
    %v395 = vadd.f32 %v376, %v394
    %396 = vmatmul.bf16.gmra.mxu0 %v362
    %v397 = vpop.f32.mrf.mxu0
    %v398 = vadd.f32 %v379, %v397
    %v399 = vpop.f32.mrf.mxu0
    %v400 = vadd.f32 %v381, %v399
    %401 = vdwg.mxu0
    %v402 = vmax.f32 %v393, 0.0
    %v403 = vmax.f32 %v395, 0.0
    %v404 = vmax.f32 %v398, 0.0
    %v405 = vmax.f32 %v400, 0.0
    %v406 = vmax.f32 %v331, %v402
    %v407 = vmax.f32 %v332, %v403
    %v408 = vmax.f32 %v333, %v404
    %v409 = vmax.f32 %v334, %v405
    %v410 = vmax.f32 %v260, %v406
    %v411 = vmax.f32 %v261, %v407
    %v412 = vmax.f32 %v262, %v408
    %v413 = vmax.f32 %v263, %v409
    %v414 = vld [vmem:[%s3] sm:$0xf]
    %v415 = vld [vmem:[%s3 + $0x4] sm:$0xf]
    %v416 = vld [vmem:[%s3 + $0x8] sm:$0xf]
    %v417 = vld [vmem:[%s3 + $0xc] sm:$0xf]
    %v418 = vld [vmem:[%s3 + $0x10] sm:$0xf]
    %v419 = vld [vmem:[%s3 + $0x14] sm:$0xf]
    %v420 = vld [vmem:[%s3 + $0x18] sm:$0xf]
    %v421 = vld [vmem:[%s3 + $0x1c] sm:$0xf]
    %v422 = vld [vmem:[%s3 + $0x20] sm:$0xf]
    %v423 = vld [vmem:[%s3 + $0x24] sm:$0xf]
    %v424 = vld [vmem:[%s3 + $0x28] sm:$0xf]
    %v425 = vld [vmem:[%s3 + $0x2c] sm:$0xf]
    %v426 = vld [vmem:[%s3 + $0x30] sm:$0xf]
    %v427 = vld [vmem:[%s3 + $0x34] sm:$0xf]
    %v428 = vld [vmem:[%s3 + $0x38] sm:$0xf]
    %v429 = vld [vmem:[%s3 + $0x3c] sm:$0xf]
    %v430 = vld [vmem:[%s3 + $0x40] sm:$0xf]
    %v431 = vld [vmem:[%s3 + $0x44] sm:$0xf]
    %v432 = vld [vmem:[%s3 + $0x48] sm:$0xf]
    %v433 = vld [vmem:[%s3 + $0x4c] sm:$0xf]
    %v434 = vld [vmem:[%s3 + $0x50] sm:$0xf]
    %v435 = vld [vmem:[%s3 + $0x54] sm:$0xf]
    %v436 = vld [vmem:[%s3 + $0x58] sm:$0xf]
    %v437 = vld [vmem:[%s3 + $0x5c] sm:$0xf]
    %v438 = vld [vmem:[%s3 + $0x60] sm:$0xf]
    %v439 = vld [vmem:[%s3 + $0x64] sm:$0xf]
    %v440 = vld [vmem:[%s3 + $0x68] sm:$0xf]
    %v441 = vld [vmem:[%s3 + $0x6c] sm:$0xf]
    %v442 = vld [vmem:[%s3 + $0x70] sm:$0xf]
    %v443 = vld [vmem:[%s3 + $0x74] sm:$0xf]
    %v444 = vld [vmem:[%s3 + $0x78] sm:$0xf]
    %v445 = vld [vmem:[%s3 + $0x7c] sm:$0xf]
    %v446 = vpack.c.bf16 %v410, %v410
    %v448 = vrot.slane %v446, 1
    %v451 = vunpack.c.l.b16 %v416
    %v452 = vunpack.c.l.b16 %v417
    %v453 = vpack.c.b16 %v452, %v451
    %vm455 = vcmask 130048
    %v457 = vsel %vm455, %v448, 0
    %459 = vmatpush.bf16.msra.mxu0 0
    %460 = vmatpush.bf16.msra.mxu0 0
    %461 = vmatpush.bf16.msra.mxu0 0
    %462 = vmatpush.bf16.msra.mxu0 0
    %463 = vmatpush.bf16.msra.mxu0 0
    %464 = vmatpush.bf16.msra.mxu0 0
    %465 = vmatpush.bf16.msra.mxu0 0
    %466 = vmatpush.bf16.msra.mxu0 %v453
    %467 = vmatmul.bf16.gmra.mxu0 %v457
    %v468 = vpop.f32.mrf.mxu0
    %v469 = vadd.f32 0.0, %v468
    %v470 = vpop.f32.mrf.mxu0
    %471 = vdwg.mxu0
    %v474 = vunpack.c.l.b16 %v414
    %v475 = vunpack.c.l.b16 %v415
    %v476 = vpack.c.b16 %v475, %v474
    %v479 = vsel %vm455, %v446, 0
    %481 = vmatpush.bf16.msra.mxu0 0
    %482 = vmatpush.bf16.msra.mxu0 0
    %483 = vmatpush.bf16.msra.mxu0 0
    %484 = vmatpush.bf16.msra.mxu0 0
    %485 = vmatpush.bf16.msra.mxu0 0
    %486 = vmatpush.bf16.msra.mxu0 0
    %487 = vmatpush.bf16.msra.mxu0 0
    %488 = vmatpush.bf16.msra.mxu0 %v476
    %489 = vmatmul.bf16.gmra.mxu0 %v479
    %v490 = vpop.f32.mrf.mxu0
    %v491 = vadd.f32 %v469, %v490
    %v492 = vpop.f32.mrf.mxu0
    %493 = vdwg.mxu0
    %v494 = vrot.slane %v446, 2
    %v497 = vunpack.c.l.b16 %v418
    %v498 = vunpack.c.l.b16 %v419
    %v499 = vpack.c.b16 %v498, %v497
    %v502 = vsel %vm455, %v494, 0
    %504 = vmatpush.bf16.msra.mxu0 0
    %505 = vmatpush.bf16.msra.mxu0 0
    %506 = vmatpush.bf16.msra.mxu0 0
    %507 = vmatpush.bf16.msra.mxu0 0
    %508 = vmatpush.bf16.msra.mxu0 0
    %509 = vmatpush.bf16.msra.mxu0 0
    %510 = vmatpush.bf16.msra.mxu0 0
    %511 = vmatpush.bf16.msra.mxu0 %v499
    %512 = vmatmul.bf16.gmra.mxu0 %v502
    %v513 = vpop.f32.mrf.mxu0
    %v514 = vadd.f32 0.0, %v513
    %v515 = vpop.f32.mrf.mxu0
    %516 = vdwg.mxu0
    %v517 = vadd.f32 %v491, %v514
    %v518 = vrot.slane %v446, 3
    %v521 = vunpack.c.l.b16 %v420
    %v522 = vunpack.c.l.b16 %v421
    %v523 = vpack.c.b16 %v522, %v521
    %v526 = vsel %vm455, %v518, 0
    %528 = vmatpush.bf16.msra.mxu0 0
    %529 = vmatpush.bf16.msra.mxu0 0
    %530 = vmatpush.bf16.msra.mxu0 0
    %531 = vmatpush.bf16.msra.mxu0 0
    %532 = vmatpush.bf16.msra.mxu0 0
    %533 = vmatpush.bf16.msra.mxu0 0
    %534 = vmatpush.bf16.msra.mxu0 0
    %535 = vmatpush.bf16.msra.mxu0 %v523
    %536 = vmatmul.bf16.gmra.mxu0 %v526
    %v537 = vpop.f32.mrf.mxu0
    %v538 = vadd.f32 0.0, %v537
    %v539 = vpop.f32.mrf.mxu0
    %540 = vdwg.mxu0
    %v541 = vadd.f32 %v517, %v538
    %v542 = vpack.c.bf16 %v411, %v411
    %v545 = vunpack.c.l.b16 %v422
    %v546 = vunpack.c.l.b16 %v423
    %v547 = vpack.c.b16 %v546, %v545
    %v550 = vsel %vm455, %v542, 0
    %552 = vmatpush.bf16.msra.mxu0 0
    %553 = vmatpush.bf16.msra.mxu0 0
    %554 = vmatpush.bf16.msra.mxu0 0
    %555 = vmatpush.bf16.msra.mxu0 0
    %556 = vmatpush.bf16.msra.mxu0 0
    %557 = vmatpush.bf16.msra.mxu0 0
    %558 = vmatpush.bf16.msra.mxu0 0
    %559 = vmatpush.bf16.msra.mxu0 %v547
    %560 = vmatmul.bf16.gmra.mxu0 %v550
    %v561 = vpop.f32.mrf.mxu0
    %v562 = vadd.f32 0.0, %v561
    %v563 = vpop.f32.mrf.mxu0
    %564 = vdwg.mxu0
    %v565 = vadd.f32 %v541, %v562
    %v567 = vrot.slane %v542, 1
    %v570 = vunpack.c.l.b16 %v424
    %v571 = vunpack.c.l.b16 %v425
    %v572 = vpack.c.b16 %v571, %v570
    %v575 = vsel %vm455, %v567, 0
    %577 = vmatpush.bf16.msra.mxu0 0
    %578 = vmatpush.bf16.msra.mxu0 0
    %579 = vmatpush.bf16.msra.mxu0 0
    %580 = vmatpush.bf16.msra.mxu0 0
    %581 = vmatpush.bf16.msra.mxu0 0
    %582 = vmatpush.bf16.msra.mxu0 0
    %583 = vmatpush.bf16.msra.mxu0 0
    %584 = vmatpush.bf16.msra.mxu0 %v572
    %585 = vmatmul.bf16.gmra.mxu0 %v575
    %v586 = vpop.f32.mrf.mxu0
    %v587 = vadd.f32 0.0, %v586
    %v588 = vpop.f32.mrf.mxu0
    %589 = vdwg.mxu0
    %v590 = vadd.f32 %v565, %v587
    %v591 = vrot.slane %v542, 2
    %v594 = vunpack.c.l.b16 %v426
    %v595 = vunpack.c.l.b16 %v427
    %v596 = vpack.c.b16 %v595, %v594
    %v599 = vsel %vm455, %v591, 0
    %601 = vmatpush.bf16.msra.mxu0 0
    %602 = vmatpush.bf16.msra.mxu0 0
    %603 = vmatpush.bf16.msra.mxu0 0
    %604 = vmatpush.bf16.msra.mxu0 0
    %605 = vmatpush.bf16.msra.mxu0 0
    %606 = vmatpush.bf16.msra.mxu0 0
    %607 = vmatpush.bf16.msra.mxu0 0
    %608 = vmatpush.bf16.msra.mxu0 %v596
    %609 = vmatmul.bf16.gmra.mxu0 %v599
    %v610 = vpop.f32.mrf.mxu0
    %v611 = vadd.f32 0.0, %v610
    %v612 = vpop.f32.mrf.mxu0
    %613 = vdwg.mxu0
    %v614 = vadd.f32 %v590, %v611
    %v615 = vrot.slane %v542, 3
    %v618 = vunpack.c.l.b16 %v428
    %v619 = vunpack.c.l.b16 %v429
    %v620 = vpack.c.b16 %v619, %v618
    %v623 = vsel %vm455, %v615, 0
    %625 = vmatpush.bf16.msra.mxu0 0
    %626 = vmatpush.bf16.msra.mxu0 0
    %627 = vmatpush.bf16.msra.mxu0 0
    %628 = vmatpush.bf16.msra.mxu0 0
    %629 = vmatpush.bf16.msra.mxu0 0
    %630 = vmatpush.bf16.msra.mxu0 0
    %631 = vmatpush.bf16.msra.mxu0 0
    %632 = vmatpush.bf16.msra.mxu0 %v620
    %633 = vmatmul.bf16.gmra.mxu0 %v623
    %v634 = vpop.f32.mrf.mxu0
    %v635 = vadd.f32 0.0, %v634
    %v636 = vpop.f32.mrf.mxu0
    %637 = vdwg.mxu0
    %v638 = vadd.f32 %v614, %v635
    %v639 = vpack.c.bf16 %v412, %v412
    %v642 = vunpack.c.l.b16 %v430
    %v643 = vunpack.c.l.b16 %v431
    %v644 = vpack.c.b16 %v643, %v642
    %v647 = vsel %vm455, %v639, 0
    %649 = vmatpush.bf16.msra.mxu0 0
    %650 = vmatpush.bf16.msra.mxu0 0
    %651 = vmatpush.bf16.msra.mxu0 0
    %652 = vmatpush.bf16.msra.mxu0 0
    %653 = vmatpush.bf16.msra.mxu0 0
    %654 = vmatpush.bf16.msra.mxu0 0
    %655 = vmatpush.bf16.msra.mxu0 0
    %656 = vmatpush.bf16.msra.mxu0 %v644
    %657 = vmatmul.bf16.gmra.mxu0 %v647
    %v658 = vpop.f32.mrf.mxu0
    %v659 = vadd.f32 0.0, %v658
    %v660 = vpop.f32.mrf.mxu0
    %661 = vdwg.mxu0
    %v662 = vadd.f32 %v638, %v659
    %v664 = vrot.slane %v639, 1
    %v667 = vunpack.c.l.b16 %v432
    %v668 = vunpack.c.l.b16 %v433
    %v669 = vpack.c.b16 %v668, %v667
    %v672 = vsel %vm455, %v664, 0
    %674 = vmatpush.bf16.msra.mxu0 0
    %675 = vmatpush.bf16.msra.mxu0 0
    %676 = vmatpush.bf16.msra.mxu0 0
    %677 = vmatpush.bf16.msra.mxu0 0
    %678 = vmatpush.bf16.msra.mxu0 0
    %679 = vmatpush.bf16.msra.mxu0 0
    %680 = vmatpush.bf16.msra.mxu0 0
    %681 = vmatpush.bf16.msra.mxu0 %v669
    %682 = vmatmul.bf16.gmra.mxu0 %v672
    %v683 = vpop.f32.mrf.mxu0
    %v684 = vadd.f32 0.0, %v683
    %v685 = vpop.f32.mrf.mxu0
    %686 = vdwg.mxu0
    %v687 = vadd.f32 %v662, %v684
    %v688 = vrot.slane %v639, 2
    %v691 = vunpack.c.l.b16 %v434
    %v692 = vunpack.c.l.b16 %v435
    %v693 = vpack.c.b16 %v692, %v691
    %v696 = vsel %vm455, %v688, 0
    %698 = vmatpush.bf16.msra.mxu0 0
    %699 = vmatpush.bf16.msra.mxu0 0
    %700 = vmatpush.bf16.msra.mxu0 0
    %701 = vmatpush.bf16.msra.mxu0 0
    %702 = vmatpush.bf16.msra.mxu0 0
    %703 = vmatpush.bf16.msra.mxu0 0
    %704 = vmatpush.bf16.msra.mxu0 0
    %705 = vmatpush.bf16.msra.mxu0 %v693
    %706 = vmatmul.bf16.gmra.mxu0 %v696
    %v707 = vpop.f32.mrf.mxu0
    %v708 = vadd.f32 0.0, %v707
    %v709 = vpop.f32.mrf.mxu0
    %710 = vdwg.mxu0
    %v711 = vadd.f32 %v687, %v708
    %v712 = vrot.slane %v639, 3
    %v715 = vunpack.c.l.b16 %v436
    %v716 = vunpack.c.l.b16 %v437
    %v717 = vpack.c.b16 %v716, %v715
    %v720 = vsel %vm455, %v712, 0
    %722 = vmatpush.bf16.msra.mxu0 0
    %723 = vmatpush.bf16.msra.mxu0 0
    %724 = vmatpush.bf16.msra.mxu0 0
    %725 = vmatpush.bf16.msra.mxu0 0
    %726 = vmatpush.bf16.msra.mxu0 0
    %727 = vmatpush.bf16.msra.mxu0 0
    %728 = vmatpush.bf16.msra.mxu0 0
    %729 = vmatpush.bf16.msra.mxu0 %v717
    %730 = vmatmul.bf16.gmra.mxu0 %v720
    %v731 = vpop.f32.mrf.mxu0
    %v732 = vadd.f32 0.0, %v731
    %v733 = vpop.f32.mrf.mxu0
    %734 = vdwg.mxu0
    %v735 = vadd.f32 %v711, %v732
    %v736 = vpack.c.bf16 %v413, %v413
    %v739 = vunpack.c.l.b16 %v438
    %v740 = vunpack.c.l.b16 %v439
    %v741 = vpack.c.b16 %v740, %v739
    %v744 = vsel %vm455, %v736, 0
    %746 = vmatpush.bf16.msra.mxu0 0
    %747 = vmatpush.bf16.msra.mxu0 0
    %748 = vmatpush.bf16.msra.mxu0 0
    %749 = vmatpush.bf16.msra.mxu0 0
    %750 = vmatpush.bf16.msra.mxu0 0
    %751 = vmatpush.bf16.msra.mxu0 0
    %752 = vmatpush.bf16.msra.mxu0 0
    %753 = vmatpush.bf16.msra.mxu0 %v741
    %754 = vmatmul.bf16.gmra.mxu0 %v744
    %v755 = vpop.f32.mrf.mxu0
    %v756 = vadd.f32 0.0, %v755
    %v757 = vpop.f32.mrf.mxu0
    %758 = vdwg.mxu0
    %v759 = vadd.f32 %v735, %v756
    %v761 = vrot.slane %v736, 1
    %v764 = vunpack.c.l.b16 %v440
    %v765 = vunpack.c.l.b16 %v441
    %v766 = vpack.c.b16 %v765, %v764
    %v769 = vsel %vm455, %v761, 0
    %771 = vmatpush.bf16.msra.mxu0 0
    %772 = vmatpush.bf16.msra.mxu0 0
    %773 = vmatpush.bf16.msra.mxu0 0
    %774 = vmatpush.bf16.msra.mxu0 0
    %775 = vmatpush.bf16.msra.mxu0 0
    %776 = vmatpush.bf16.msra.mxu0 0
    %777 = vmatpush.bf16.msra.mxu0 0
    %778 = vmatpush.bf16.msra.mxu0 %v766
    %779 = vmatmul.bf16.gmra.mxu0 %v769
    %v780 = vpop.f32.mrf.mxu0
    %v781 = vadd.f32 0.0, %v780
    %v782 = vpop.f32.mrf.mxu0
    %783 = vdwg.mxu0
    %v784 = vadd.f32 %v759, %v781
    %v785 = vrot.slane %v736, 2
    %v788 = vunpack.c.l.b16 %v442
    %v789 = vunpack.c.l.b16 %v443
    %v790 = vpack.c.b16 %v789, %v788
    %v793 = vsel %vm455, %v785, 0
    %795 = vmatpush.bf16.msra.mxu0 0
    %796 = vmatpush.bf16.msra.mxu0 0
    %797 = vmatpush.bf16.msra.mxu0 0
    %798 = vmatpush.bf16.msra.mxu0 0
    %799 = vmatpush.bf16.msra.mxu0 0
    %800 = vmatpush.bf16.msra.mxu0 0
    %801 = vmatpush.bf16.msra.mxu0 0
    %802 = vmatpush.bf16.msra.mxu0 %v790
    %803 = vmatmul.bf16.gmra.mxu0 %v793
    %v804 = vpop.f32.mrf.mxu0
    %v805 = vadd.f32 0.0, %v804
    %v806 = vpop.f32.mrf.mxu0
    %807 = vdwg.mxu0
    %v808 = vadd.f32 %v784, %v805
    %v809 = vrot.slane %v736, 3
    %v812 = vunpack.c.l.b16 %v444
    %v813 = vunpack.c.l.b16 %v445
    %v814 = vpack.c.b16 %v813, %v812
    %v817 = vsel %vm455, %v809, 0
    %819 = vmatpush.bf16.msra.mxu0 0
    %820 = vmatpush.bf16.msra.mxu0 0
    %821 = vmatpush.bf16.msra.mxu0 0
    %822 = vmatpush.bf16.msra.mxu0 0
    %823 = vmatpush.bf16.msra.mxu0 0
    %824 = vmatpush.bf16.msra.mxu0 0
    %825 = vmatpush.bf16.msra.mxu0 0
    %826 = vmatpush.bf16.msra.mxu0 %v814
    %827 = vmatmul.bf16.gmra.mxu0 %v817
    %v828 = vpop.f32.mrf.mxu0
    %v829 = vadd.f32 0.0, %v828
    %v830 = vpop.f32.mrf.mxu0
    %831 = vdwg.mxu0
    %v832 = vadd.f32 %v808, %v829
    %v833 = vld [vmem:[%s4] sm:$0x1]
    %v835 = vperm.slane %v833, 0
    %v837 = vadd.f32 %v832, %v835
    %v838 = vmax.f32 %v837, 0.0
    %v839 = vpack.c.bf16 %v838, %v838
    %v840 = vld [vmem:[%s5] sm:$0xf]
    %v841 = vld [vmem:[%s5 + $0x4] sm:$0xf]
    %v842 = vld [vmem:[%s5 + $0x8] sm:$0xf]
    %v843 = vld [vmem:[%s5 + $0xc] sm:$0xf]
    %v844 = vld [vmem:[%s5 + $0x10] sm:$0xf]
    %v845 = vld [vmem:[%s5 + $0x14] sm:$0xf]
    %v846 = vld [vmem:[%s5 + $0x18] sm:$0xf]
    %v847 = vld [vmem:[%s5 + $0x1c] sm:$0xf]
    %v848 = vld [vmem:[%s5 + $0x20] sm:$0xf]
    %v849 = vld [vmem:[%s5 + $0x24] sm:$0xf]
    %v850 = vld [vmem:[%s5 + $0x28] sm:$0xf]
    %v851 = vld [vmem:[%s5 + $0x2c] sm:$0xf]
    %v852 = vld [vmem:[%s5 + $0x30] sm:$0xf]
    %v853 = vld [vmem:[%s5 + $0x34] sm:$0xf]
    %v854 = vld [vmem:[%s5 + $0x38] sm:$0xf]
    %v855 = vld [vmem:[%s5 + $0x3c] sm:$0xf]
    %v856 = vld [vmem:[%s6] sm:$0x1]
    %v858 = vperm.slane %v856, 0
    %v876 = vunpack.c.l.b16 %v840
    %v877 = vunpack.c.l.b16 %v841
    %v878 = vunpack.c.l.b16 %v842
    %v879 = vunpack.c.l.b16 %v843
    %v880 = vunpack.c.l.b16 %v844
    %v881 = vunpack.c.l.b16 %v845
    %v882 = vunpack.c.l.b16 %v846
    %v883 = vunpack.c.l.b16 %v847
    %v884 = vunpack.c.l.b16 %v848
    %v885 = vunpack.c.l.b16 %v849
    %v886 = vunpack.c.l.b16 %v850
    %v887 = vunpack.c.l.b16 %v851
    %v888 = vunpack.c.l.b16 %v852
    %v889 = vunpack.c.l.b16 %v853
    %v890 = vunpack.c.l.b16 %v854
    %v891 = vunpack.c.l.b16 %v855
    %v892 = vpack.c.b16 %v877, %v876
    %v893 = vpack.c.b16 %v879, %v878
    %v894 = vpack.c.b16 %v881, %v880
    %v895 = vpack.c.b16 %v883, %v882
    %v896 = vpack.c.b16 %v885, %v884
    %v897 = vpack.c.b16 %v887, %v886
    %v898 = vpack.c.b16 %v889, %v888
    %v899 = vpack.c.b16 %v891, %v890
    %908 = vmatpush.bf16.msra.mxu0 %v899
    %909 = vmatpush.bf16.msra.mxu0 %v898
    %910 = vmatpush.bf16.msra.mxu0 %v897
    %911 = vmatpush.bf16.msra.mxu0 %v896
    %912 = vmatpush.bf16.msra.mxu0 %v895
    %913 = vmatpush.bf16.msra.mxu0 %v894
    %914 = vmatpush.bf16.msra.mxu0 %v893
    %915 = vmatpush.bf16.msra.mxu0 %v892
    %916 = vmatmul.bf16.gmra.mxu0 %v839
    %v917 = vpop.f32.mrf.mxu0
    %v918 = vadd.f32 %v858, %v917
    %v919 = vpop.f32.mrf.mxu0
    %920 = vdwg.mxu0
    %v921 = vmax.f32 %v918, 0.0
    %v922 = vpack.c.bf16 %v921, %v921
    %v923 = vld [vmem:[%s7] sm:$0xf]
    %v924 = vld [vmem:[%s7 + $0x4] sm:$0xf]
    %v925 = vld [vmem:[%s7 + $0x8] sm:$0xf]
    %v926 = vld [vmem:[%s7 + $0xc] sm:$0xf]
    %v927 = vld [vmem:[%s7 + $0x10] sm:$0xf]
    %v928 = vld [vmem:[%s7 + $0x14] sm:$0xf]
    %v929 = vld [vmem:[%s7 + $0x18] sm:$0xf]
    %v930 = vld [vmem:[%s7 + $0x1c] sm:$0xf]
    %v931 = vld [vmem:[%s7 + $0x20] sm:$0xf]
    %v932 = vld [vmem:[%s7 + $0x24] sm:$0xf]
    %v933 = vld [vmem:[%s7 + $0x28] sm:$0xf]
    %v934 = vld [vmem:[%s7 + $0x2c] sm:$0xf]
    %v935 = vld [vmem:[%s7 + $0x30] sm:$0xf]
    %v936 = vld [vmem:[%s7 + $0x34] sm:$0xf]
    %v937 = vld [vmem:[%s7 + $0x38] sm:$0xf]
    %v938 = vld [vmem:[%s7 + $0x3c] sm:$0xf]
    %v939 = vld [vmem:[%s8] sm:$0x1]
    %v941 = vperm.slane %v939, 0
    %v959 = vunpack.c.l.b16 %v923
    %v960 = vunpack.c.l.b16 %v924
    %v961 = vunpack.c.l.b16 %v925
    %v962 = vunpack.c.l.b16 %v926
    %v963 = vunpack.c.l.b16 %v927
    %v964 = vunpack.c.l.b16 %v928
    %v965 = vunpack.c.l.b16 %v929
    %v966 = vunpack.c.l.b16 %v930
    %v967 = vunpack.c.l.b16 %v931
    %v968 = vunpack.c.l.b16 %v932
    %v969 = vunpack.c.l.b16 %v933
    %v970 = vunpack.c.l.b16 %v934
    %v971 = vunpack.c.l.b16 %v935
    %v972 = vunpack.c.l.b16 %v936
    %v973 = vunpack.c.l.b16 %v937
    %v974 = vunpack.c.l.b16 %v938
    %v975 = vpack.c.b16 %v960, %v959
    %v976 = vpack.c.b16 %v962, %v961
    %v977 = vpack.c.b16 %v964, %v963
    %v978 = vpack.c.b16 %v966, %v965
    %v979 = vpack.c.b16 %v968, %v967
    %v980 = vpack.c.b16 %v970, %v969
    %v981 = vpack.c.b16 %v972, %v971
    %v982 = vpack.c.b16 %v974, %v973
    %991 = vmatpush.bf16.msra.mxu0 %v982
    %992 = vmatpush.bf16.msra.mxu0 %v981
    %993 = vmatpush.bf16.msra.mxu0 %v980
    %994 = vmatpush.bf16.msra.mxu0 %v979
    %995 = vmatpush.bf16.msra.mxu0 %v978
    %996 = vmatpush.bf16.msra.mxu0 %v977
    %997 = vmatpush.bf16.msra.mxu0 %v976
    %998 = vmatpush.bf16.msra.mxu0 %v975
    %999 = vmatmul.bf16.gmra.mxu0 %v922
    %v1000 = vpop.f32.mrf.mxu0
    %v1001 = vadd.f32 %v941, %v1000
    %v1002 = vpop.f32.mrf.mxu0
    %1003 = vdwg.mxu0
    %vm1004 = vcmask 74752
    %1005 = vst.msk [vmem:[#allocation2] sm:$0x3] %vm1004, %v1001
    // Predicated region
    $region38: #{net_forward.3} parent=1 // pred_check
      _
    $region39: #{net_forward.3} parent=1 // pred_check_branch
      %1007 = sbr.rel (0) target = $region41
    $region40: #{net_forward.3} parent=1 // pred_region
      %1009 = vsyncadd [#allocation3], 0
      %s1011 = sshll.u32 [#allocation2], 4
      %s1012 = int_to_ptr.vmem [resolvable:$true] %s1011
      %s1013 = sshll.u32 %s9, 4
      %s1014 = int_to_ptr.hbm [resolvable:$true] %s1013
      %1016 = dma.vmem_to_hbm [thread:$0]  %s1012, 32, %s1014, [#allocation3]
    $region41: #{net_forward.3} parent=1 // pred_fallthru
      _
    // Predicated region
    $region42: #{net_forward.3} parent=1 // pred_check
      _
    $region43: #{net_forward.3} parent=1 // pred_check_branch
      %1018 = sbr.rel (0) target = $region45
    $region44: #{net_forward.3} parent=1 // pred_region
      %1020 = dma.done [#allocation3], 32
    $region45: #{net_forward.3} parent=1 // pred_fallthru
      _
    %1021 = vsyncpa [#allocation3], 1

</llo_original>
